<compile_context>
chip_gen: v5e
topology: v5e:2x2
jax: 0.10.0
libtpu: 0.0.40
codegen_flags: <defaults>
</compile_context>

<pallas_src>
import functools

import jax
import jax.numpy as jnp
import numpy as np
from jax.experimental import pallas as pl
from jax.experimental.pallas import tpu as pltpu

BN_EPS = 1e-5


def _round_up(x, m):
    return -(-x // m) * m


def _cdiv(a, b):
    return -(-a // b)


# ----------------------------------------------------------------------------
# Pallas kernels
# ----------------------------------------------------------------------------
def _conv3x3s2_kernel(xq_ref, w_ref, y_ref, st_ref, patches_ref, *,
                      cin, wq, wo, ho, band, ho_pad):
    """One (batch, row-band) grid step of a 3x3/s2 conv + BN partial stats.

    xq_ref     : (4*cin, (band+2)*wq) bf16 -- stride-2 parity planes of the
                 zero-padded input for this band; rows flattened into
                 128-aligned wq-lane blocks (plane q = 2*(ky&1)+(kx&1)).
    w_ref      : (cout, 9*cin) bf16        -- weights, K = (ky*3+kx)*cin + ci.
    y_ref      : (cout, band*wq) bf16      -- pre-BN conv output (lane-dense).
    st_ref     : (cout, 2) f32             -- per-channel [sum, sum_sq].
    patches_ref: (9*cin, band*wq) bf16     -- VMEM scratch for the patches.
    """
    pblk = band * wq

    # Assemble the (9*cin, band*wq) patch matrix with 9 direct sub-block
    # stores.  Each tap is a static lane window of the flattened plane slab;
    # no reshape/concatenate relayouts.
    for ky in range(3):
        for kx in range(3):
            t = ky * 3 + kx
            q = (ky % 2) * 2 + (kx % 2)
            a, b = ky // 2, kx // 2
            start = a * wq + b
            patches_ref[t * cin:(t + 1) * cin, :] = (
                xq_ref[q * cin:(q + 1) * cin, start:start + pblk])

    # Single K = 9*cin MXU matmul, bf16 operands, f32 accumulation.
    acc = jnp.dot(w_ref[...], patches_ref[...],
                  preferred_element_type=jnp.float32)         # (cout, band*wq)

    # Zero the padding lanes (col >= wo) and padded rows (row >= ho) so the
    # stored activation is clean and the fused BN statistics stay exact.
    lane = jax.lax.broadcasted_iota(jnp.int32, (1, pblk), 1)
    valid = (lane % wq) < wo
    if ho_pad > ho:                                  # static: ragged last band
        row = lane // wq + pl.program_id(1) * band
        valid = jnp.logical_and(valid, row < ho)
    acc = jnp.where(valid, acc, 0.0)

    y_ref[...] = acc.astype(y_ref.dtype)

    # Fused BatchNorm partial statistics, taken from the f32 accumulator.
    ssum = jnp.sum(acc, axis=1, keepdims=True)
    ssq = jnp.sum(acc * acc, axis=1, keepdims=True)
    st_ref[...] = jnp.concatenate([ssum, ssq], axis=1)


def _bn_apply_kernel(y_ref, sc_ref, sh_ref, o_ref):
    """Tiled affine normalize: o = y * scale + shift (per-row scale/shift)."""
    y = y_ref[...].astype(jnp.float32)
    o_ref[...] = (y * sc_ref[...] + sh_ref[...]).astype(o_ref.dtype)


# ----------------------------------------------------------------------------
# JAX-side layout glue (1x traffic + a 2-row halo per band; no im2col in HBM)
# ----------------------------------------------------------------------------
def _build_plane_bands(x_nchw, ho, wo, wq, band, nb, dtype=jnp.bfloat16):
    """Zero-pad, stride-2 space-to-depth, per-band slabs.

    Returns (n, nb, 4*c, (band+2)*wq): for band j, rows [j*band, j*band+band+2)
    of the parity planes, each row zero-padded from wo+1 to wq lanes and
    flattened onto the lane axis.
    """
    n, c, h, w = x_nchw.shape
    x = x_nchw.astype(dtype)
    hp, wp = 2 * (ho + 1), 2 * (wo + 1)
    xp = jnp.pad(x, ((0, 0), (0, 0), (1, hp - h - 1), (1, wp - w - 1)))
    xr = xp.reshape(n, c, ho + 1, 2, wo + 1, 2)
    xq = jnp.transpose(xr, (0, 3, 5, 1, 2, 4))          # (n, py, px, c, i, j)
    xq = xq.reshape(n, 4 * c, ho + 1, wo + 1)
    rows_needed = nb * band + 2
    xq = jnp.pad(xq, ((0, 0), (0, 0),
                      (0, rows_needed - (ho + 1)), (0, wq - (wo + 1))))
    row_idx = jnp.arange(nb)[:, None] * band + jnp.arange(band + 2)[None, :]
    xb = xq[:, :, row_idx, :]                           # (n, 4c, nb, band+2, wq)
    xb = jnp.transpose(xb, (0, 2, 1, 3, 4))
    return xb.reshape(n, nb, 4 * c, (band + 2) * wq)


def _pick_band(ho, wq, cin, cout, budget_bytes=8 << 20):
    """Output-row band size bounding the per-step VMEM working set."""
    per_row = wq * (2 * (4 * cin * 2) + 9 * cin * 2 + 2 * (cout * 2)
                    + 2 * cout * 4)
    band = int(max(1, min(ho, budget_bytes // max(per_row, 1))))
    nb = _cdiv(ho, band)
    band = _cdiv(ho, nb)          # rebalance so the last band is not all pad
    return band, nb


def _largest_divisor_leq(x, cap):
    cap = max(1, min(x, cap))
    for d in range(cap, 0, -1):
        if x % d == 0:
            return d
    return 1


# ----------------------------------------------------------------------------
# conv3x3/s2 + fused BatchNorm statistics
# ----------------------------------------------------------------------------
def _conv3x3s2_bn_stats(x_nchw, w_oihw):
    n, cin, h, w = x_nchw.shape
    cout = w_oihw.shape[0]
    ho = (h - 1) // 2 + 1
    wo = (w - 1) // 2 + 1
    wq = _round_up(wo + 1, 128)
    band, nb = _pick_band(ho, wq, cin, cout)
    ho_pad = band * nb

    xqb = _build_plane_bands(x_nchw, ho, wo, wq, band, nb)
    w2d = jnp.transpose(w_oihw, (0, 2, 3, 1)).reshape(cout, 9 * cin)
    w2d = w2d.astype(jnp.bfloat16)

    # Per-band VMEM footprint -> scoped limit (floor 32 MiB, cap 48 MiB: stays
    # well under v7x's 64 MiB/TC, no starvation on v5e/v6e).
    xq_blk = 4 * cin * (band + 2) * wq * 2
    y_blk = cout * band * wq * 2
    patches = 9 * cin * band * wq * 2
    acc_tmp = cout * band * wq * 4
    footprint = (2 * xq_blk + 2 * y_blk + patches + 2 * acc_tmp
                 + 2 * cout * 9 * cin * 2)
    vmem_limit = int(min(max(4 * footprint, 32 << 20), 48 << 20))

    y, stats = pl.pallas_call(
        functools.partial(_conv3x3s2_kernel, cin=cin, wq=wq, wo=wo, ho=ho,
                          band=band, ho_pad=ho_pad),
        out_shape=(jax.ShapeDtypeStruct((n, cout, ho_pad * wq), jnp.bfloat16),
                   jax.ShapeDtypeStruct((n, nb, cout, 2), jnp.float32)),
        grid=(n, nb),
        in_specs=[
            pl.BlockSpec((None, None, 4 * cin, (band + 2) * wq),
                         lambda i, j: (i, j, 0, 0)),
            pl.BlockSpec((cout, 9 * cin), lambda i, j: (0, 0)),
        ],
        out_specs=(
            pl.BlockSpec((None, cout, band * wq), lambda i, j: (i, 0, j)),
            pl.BlockSpec((None, None, cout, 2), lambda i, j: (i, j, 0, 0)),
        ),
        scratch_shapes=[pltpu.VMEM((9 * cin, band * wq), jnp.bfloat16)],
        compiler_params=pltpu.CompilerParams(
            dimension_semantics=("parallel", "parallel"),
            vmem_limit_bytes=vmem_limit),
    )(xqb, w2d)

    stats_sum = jnp.sum(stats, axis=(0, 1))             # (cout, 2)
    geom = dict(n=n, cout=cout, ho=ho, wo=wo, wq=wq, ho_pad=ho_pad)
    return y, stats_sum, geom


def _finalize_bn(stats_sum, gamma, beta, count, eps=BN_EPS):
    mean = stats_sum[:, 0] / count
    var = jnp.maximum(stats_sum[:, 1] / count - mean * mean, 0.0)
    inv = jax.lax.rsqrt(var + eps)
    scale = gamma * inv
    shift = beta - mean * scale
    return scale, shift


def _affine_to_nchw(y, scale, shift, geom):
    """Undo the padded layout and apply the previous layer's BN affine (f32).

    This replaces a separate BN-apply pallas_call for the inner layer: XLA
    fuses the affine into the next layer's pad/space-to-depth pass, saving one
    HBM round trip of the intermediate activation.
    """
    n, c = geom["n"], geom["cout"]
    y4 = y.reshape(n, c, geom["ho_pad"], geom["wq"])
    y4 = y4[:, :, :geom["ho"], :geom["wo"]].astype(jnp.float32)
    return y4 * scale[None, :, None, None] + shift[None, :, None, None]


def _bn_apply_final(y, scale, shift, geom):
    """Final-layer BN apply: 2-D (n*cout, P_pad) slab, 128-aligned tiles."""
    n, c = geom["n"], geom["cout"]
    p = geom["ho_pad"] * geom["wq"]
    rows = n * c
    y2 = y.reshape(rows, p)
    sc = jnp.broadcast_to(scale[None, :], (n, c)).reshape(rows, 1)
    sh = jnp.broadcast_to(shift[None, :], (n, c)).reshape(rows, 1)
    sc = sc.astype(jnp.float32)
    sh = sh.astype(jnp.float32)

    if rows <= 256:
        rt = rows
    else:
        rt = rows
        for d in range(256, 7, -1):
            if rows % d == 0 and d % 8 == 0:
                rt = d
                break
    lt = geom["wq"] * _largest_divisor_leq(geom["ho_pad"],
                                           max(1, 4096 // geom["wq"]))

    out = pl.pallas_call(
        _bn_apply_kernel,
        out_shape=jax.ShapeDtypeStruct((rows, p), jnp.float32),
        grid=(rows // rt, p // lt),
        in_specs=[
            pl.BlockSpec((rt, lt), lambda i, j: (i, j)),
            pl.BlockSpec((rt, 1), lambda i, j: (i, 0)),
            pl.BlockSpec((rt, 1), lambda i, j: (i, 0)),
        ],
        out_specs=pl.BlockSpec((rt, lt), lambda i, j: (i, j)),
        compiler_params=pltpu.CompilerParams(
            dimension_semantics=("parallel", "parallel"),
            vmem_limit_bytes=32 << 20),
    )(y2, sc, sh)

    out = out.reshape(n, c, geom["ho_pad"], geom["wq"])
    return out[:, :, :geom["ho"], :geom["wo"]]


# ----------------------------------------------------------------------------
# Full module forward
# ----------------------------------------------------------------------------
def down_sampling_stage1_forward(x_nchw, params):
    """Matches down_sampling_stage1.forward; NCHW in/out like PyTorch.

    NOTE: conv biases (params["b1"], params["b2"]) are mathematically cancelled
    by the training-mode BatchNorm mean subtraction that immediately follows
    each conv, so the kernels intentionally do not apply them.
    """
    n = x_nchw.shape[0]

    # Layer 1: conv + fused BN statistics (BN apply folded into layer-2 prep).
    y1, s1, g1 = _conv3x3s2_bn_stats(x_nchw, params["w1"])
    sc1, sh1 = _finalize_bn(s1, params["g1"], params["be1"],
                            float(n * g1["ho"] * g1["wo"]))
    x2 = _affine_to_nchw(y1, sc1, sh1, g1)

    # Layer 2: conv + fused BN statistics, then Pallas BN apply.
    y2, s2, g2 = _conv3x3s2_bn_stats(x2, params["w2"])
    sc2, sh2 = _finalize_bn(s2, params["g2"], params["be2"],
                            float(n * g2["ho"] * g2["wo"]))
    return _bn_apply_final(y2, sc2, sh2, g2)


# ----------------------------------------------------------------------------
# Parameter construction + pure-JAX reference (with biases, for equivalence)
# ----------------------------------------------------------------------------
def init_params(key, in_chanel, out_chanel):
    mid = out_chanel // 2
    k1, k2, k3, k4 = jax.random.split(key, 4)
    return {
        "w1": 0.1 * jax.random.normal(k1, (mid, in_chanel, 3, 3), jnp.float32),
        "b1": 0.1 * jax.random.normal(k2, (mid,), jnp.float32),
        "g1": jnp.ones((mid,), jnp.float32),
        "be1": jnp.zeros((mid,), jnp.float32),
        "w2": 0.1 * jax.random.normal(k3, (out_chanel, mid, 3, 3), jnp.float32),
        "b2": 0.1 * jax.random.normal(k4, (out_chanel,), jnp.float32),
        "g2": jnp.ones((out_chanel,), jnp.float32),
        "be2": jnp.zeros((out_chanel,), jnp.float32),
    }


def _ref_forward(x_nchw, params):
    def conv(x, w, b):
        y = jax.lax.conv_general_dilated(
            x, w, window_strides=(2, 2), padding=((1, 1), (1, 1)),
            dimension_numbers=("NCHW", "OIHW", "NCHW"),
            precision=jax.lax.Precision.HIGHEST)
        return y + b[None, :, None, None]

    def bn(x, g, be):
        mean = x.mean(axis=(0, 2, 3), keepdims=True)
        var = ((x - mean) ** 2).mean(axis=(0, 2, 3), keepdims=True)
        return ((x - mean) * jax.lax.rsqrt(var + BN_EPS)
                * g[None, :, None, None] + be[None, :, None, None])

    x = conv(x_nchw, params["w1"], params["b1"])
    x = bn(x, params["g1"], params["be1"])
    x = conv(x, params["w2"], params["b2"])
    x = bn(x, params["g2"], params["be2"])
    return x


# ----------------------------------------------------------------------------
if __name__ == "__main__":
    key = jax.random.PRNGKey(0)
    kx, kp = jax.random.split(key)

    in_chanel, out_chanel = 4, 8
    x = jax.random.normal(kx, (2, in_chanel, 16, 16), jnp.float32)  # NCHW
    params = init_params(kp, in_chanel, out_chanel)

    y = jax.jit(down_sampling_stage1_forward)(x, params)
    y = jax.block_until_ready(y)

    y_ref = _ref_forward(x, params)
    assert y.shape == (2, out_chanel, 4, 4), y.shape
    # bf16 MXU operands + bf16 inter-layer activation storage -> ~1e-2 abs err
    # on O(1) BatchNorm-normalized outputs.
    np.testing.assert_allclose(np.asarray(y), np.asarray(y_ref),
                               rtol=3e-2, atol=3e-2)
    print("KERNEL_OK")
</pallas_src>

<mosaic_0001>
module attributes {stable_mosaic.version = 11 : i64} {
  func.func @_conv3x3s2_kernel(%arg0: i32, %arg1: i32, %arg2: memref<1x1x16x1280xbf16, #tpu.memory_space<vmem>>, %arg3: memref<4x36xbf16, #tpu.memory_space<vmem>>, %arg4: memref<1x4x1024xbf16, #tpu.memory_space<vmem>>, %arg5: memref<1x1x4x2xf32, #tpu.memory_space<vmem>>, %arg6: memref<36x1024xbf16, #tpu.memory_space<vmem>>) attributes {dimension_semantics = [#tpu.dimension_semantics<parallel>, #tpu.dimension_semantics<parallel>], iteration_bounds = array<i64: 2, 1>, scalar_prefetch = 0 : i64, scratch_operands = 1 : i64, tpu.core_type = #tpu.core_type<tc>, window_params = [{transform_indices = @transform_0, window_bounds = array<i64: 1, 1, 16, 1280>}, {pipeline_mode = #tpu.pipeline_mode<synchronous>, transform_indices = @transform_1, window_bounds = array<i64: 4, 36>}, {transform_indices = @transform_2, window_bounds = array<i64: 1, 4, 1024>}, {transform_indices = @transform_3, window_bounds = array<i64: 1, 1, 4, 2>}]} {
    %c0 = arith.constant 0 : index
    %c0_0 = arith.constant 0 : index
    %c0_1 = arith.constant 0 : index
    %c0_2 = arith.constant 0 : index
    %0 = vector.load %arg2[%c0, %c0_0, %c0_1, %c0_2] : memref<1x1x16x1280xbf16, #tpu.memory_space<vmem>>, vector<1x1x4x1024xbf16>
    %1 = vector.shape_cast %0 : vector<1x1x4x1024xbf16> to vector<4x1024xbf16>
    %c0_3 = arith.constant 0 : index
    %c0_4 = arith.constant 0 : index
    %2 = vector.load %arg6[%c0_3, %c0_4] : memref<36x1024xbf16, #tpu.memory_space<vmem>>, vector<4x1024xbf16>
    tpu.vector_store %arg6[%c0_3, %c0_4], %1 {strides = array<i32>} : memref<36x1024xbf16, #tpu.memory_space<vmem>>, vector<4x1024xbf16>,
    %c0_5 = arith.constant 0 : index
    %c0_6 = arith.constant 0 : index
    %c4 = arith.constant 4 : index
    %c0_7 = arith.constant 0 : index
    %3 = vector.load %arg2[%c0_5, %c0_6, %c4, %c0_7] : memref<1x1x16x1280xbf16, #tpu.memory_space<vmem>>, vector<1x1x4x1024xbf16>
    %4 = vector.shape_cast %3 : vector<1x1x4x1024xbf16> to vector<4x1024xbf16>
    %c4_8 = arith.constant 4 : index
    %c0_9 = arith.constant 0 : index
    %5 = vector.load %arg6[%c4_8, %c0_9] : memref<36x1024xbf16, #tpu.memory_space<vmem>>, vector<4x1024xbf16>
    tpu.vector_store %arg6[%c4_8, %c0_9], %4 {strides = array<i32>} : memref<36x1024xbf16, #tpu.memory_space<vmem>>, vector<4x1024xbf16>,
    %c0_10 = arith.constant 0 : index
    %c0_11 = arith.constant 0 : index
    %c0_12 = arith.constant 0 : index
    %c1 = arith.constant 1 : index
    %6 = vector.load %arg2[%c0_10, %c0_11, %c0_12, %c1] : memref<1x1x16x1280xbf16, #tpu.memory_space<vmem>>, vector<1x1x4x1024xbf16>
    %7 = vector.shape_cast %6 : vector<1x1x4x1024xbf16> to vector<4x1024xbf16>
    %c8 = arith.constant 8 : index
    %c0_13 = arith.constant 0 : index
    %8 = vector.load %arg6[%c8, %c0_13] : memref<36x1024xbf16, #tpu.memory_space<vmem>>, vector<4x1024xbf16>
    tpu.vector_store %arg6[%c8, %c0_13], %7 {strides = array<i32>} : memref<36x1024xbf16, #tpu.memory_space<vmem>>, vector<4x1024xbf16>,
    %c0_14 = arith.constant 0 : index
    %c0_15 = arith.constant 0 : index
    %c8_16 = arith.constant 8 : index
    %c0_17 = arith.constant 0 : index
    %9 = vector.load %arg2[%c0_14, %c0_15, %c8_16, %c0_17] : memref<1x1x16x1280xbf16, #tpu.memory_space<vmem>>, vector<1x1x4x1024xbf16>
    %10 = vector.shape_cast %9 : vector<1x1x4x1024xbf16> to vector<4x1024xbf16>
    %c12 = arith.constant 12 : index
    %c0_18 = arith.constant 0 : index
    %11 = vector.load %arg6[%c12, %c0_18] : memref<36x1024xbf16, #tpu.memory_space<vmem>>, vector<4x1024xbf16>
    tpu.vector_store %arg6[%c12, %c0_18], %10 {strides = array<i32>} : memref<36x1024xbf16, #tpu.memory_space<vmem>>, vector<4x1024xbf16>,
    %c0_19 = arith.constant 0 : index
    %c0_20 = arith.constant 0 : index
    %c12_21 = arith.constant 12 : index
    %c0_22 = arith.constant 0 : index
    %12 = vector.load %arg2[%c0_19, %c0_20, %c12_21, %c0_22] : memref<1x1x16x1280xbf16, #tpu.memory_space<vmem>>, vector<1x1x4x1024xbf16>
    %13 = vector.shape_cast %12 : vector<1x1x4x1024xbf16> to vector<4x1024xbf16>
    %c16 = arith.constant 16 : index
    %c0_23 = arith.constant 0 : index
    %14 = vector.load %arg6[%c16, %c0_23] : memref<36x1024xbf16, #tpu.memory_space<vmem>>, vector<4x1024xbf16>
    tpu.vector_store %arg6[%c16, %c0_23], %13 {strides = array<i32>} : memref<36x1024xbf16, #tpu.memory_space<vmem>>, vector<4x1024xbf16>,
    %c0_24 = arith.constant 0 : index
    %c0_25 = arith.constant 0 : index
    %c8_26 = arith.constant 8 : index
    %c1_27 = arith.constant 1 : index
    %15 = vector.load %arg2[%c0_24, %c0_25, %c8_26, %c1_27] : memref<1x1x16x1280xbf16, #tpu.memory_space<vmem>>, vector<1x1x4x1024xbf16>
    %16 = vector.shape_cast %15 : vector<1x1x4x1024xbf16> to vector<4x1024xbf16>
    %c20 = arith.constant 20 : index
    %c0_28 = arith.constant 0 : index
    %17 = vector.load %arg6[%c20, %c0_28] : memref<36x1024xbf16, #tpu.memory_space<vmem>>, vector<4x1024xbf16>
    tpu.vector_store %arg6[%c20, %c0_28], %16 {strides = array<i32>} : memref<36x1024xbf16, #tpu.memory_space<vmem>>, vector<4x1024xbf16>,
    %c0_29 = arith.constant 0 : index
    %c0_30 = arith.constant 0 : index
    %c0_31 = arith.constant 0 : index
    %c128 = arith.constant 128 : index
    %18 = vector.load %arg2[%c0_29, %c0_30, %c0_31, %c128] : memref<1x1x16x1280xbf16, #tpu.memory_space<vmem>>, vector<1x1x4x1024xbf16>
    %19 = vector.shape_cast %18 : vector<1x1x4x1024xbf16> to vector<4x1024xbf16>
    %c24 = arith.constant 24 : index
    %c0_32 = arith.constant 0 : index
    %20 = vector.load %arg6[%c24, %c0_32] : memref<36x1024xbf16, #tpu.memory_space<vmem>>, vector<4x1024xbf16>
    tpu.vector_store %arg6[%c24, %c0_32], %19 {strides = array<i32>} : memref<36x1024xbf16, #tpu.memory_space<vmem>>, vector<4x1024xbf16>,
    %c0_33 = arith.constant 0 : index
    %c0_34 = arith.constant 0 : index
    %c4_35 = arith.constant 4 : index
    %c128_36 = arith.constant 128 : index
    %21 = vector.load %arg2[%c0_33, %c0_34, %c4_35, %c128_36] : memref<1x1x16x1280xbf16, #tpu.memory_space<vmem>>, vector<1x1x4x1024xbf16>
    %22 = vector.shape_cast %21 : vector<1x1x4x1024xbf16> to vector<4x1024xbf16>
    %c28 = arith.constant 28 : index
    %c0_37 = arith.constant 0 : index
    %23 = vector.load %arg6[%c28, %c0_37] : memref<36x1024xbf16, #tpu.memory_space<vmem>>, vector<4x1024xbf16>
    tpu.vector_store %arg6[%c28, %c0_37], %22 {strides = array<i32>} : memref<36x1024xbf16, #tpu.memory_space<vmem>>, vector<4x1024xbf16>,
    %c0_38 = arith.constant 0 : index
    %c0_39 = arith.constant 0 : index
    %c0_40 = arith.constant 0 : index
    %c129 = arith.constant 129 : index
    %24 = vector.load %arg2[%c0_38, %c0_39, %c0_40, %c129] : memref<1x1x16x1280xbf16, #tpu.memory_space<vmem>>, vector<1x1x4x1024xbf16>
    %25 = vector.shape_cast %24 : vector<1x1x4x1024xbf16> to vector<4x1024xbf16>
    %c32 = arith.constant 32 : index
    %c0_41 = arith.constant 0 : index
    %26 = vector.load %arg6[%c32, %c0_41] : memref<36x1024xbf16, #tpu.memory_space<vmem>>, vector<4x1024xbf16>
    tpu.vector_store %arg6[%c32, %c0_41], %25 {strides = array<i32>} : memref<36x1024xbf16, #tpu.memory_space<vmem>>, vector<4x1024xbf16>,
    %c0_42 = arith.constant 0 : index
    %c0_43 = arith.constant 0 : index
    %27 = vector.load %arg3[%c0_42, %c0_43] : memref<4x36xbf16, #tpu.memory_space<vmem>>, vector<4x36xbf16>
    %c0_44 = arith.constant 0 : index
    %c0_45 = arith.constant 0 : index
    %28 = vector.load %arg6[%c0_44, %c0_45] : memref<36x1024xbf16, #tpu.memory_space<vmem>>, vector<36x1024xbf16>
    %cst = arith.constant dense<0.000000e+00> : vector<4x1024xf32>
    %29 = tpu.matmul %27, %28, %cst {dimension_numbers = #tpu.dot_dimension_numbers<[1], [0], [0], [1], [0, 0, 1, 1], [], []>} : vector<4x36xbf16>, vector<36x1024xbf16>, vector<4x1024xf32> -> vector<4x1024xf32>
    %30 = tpu.iota {dimensions = array<i32: 1>} : vector<1x1024xi32>
    %c128_i32 = arith.constant 128 : i32
    %c0_i32 = arith.constant 0 : i32
    %31 = arith.cmpi eq, %c128_i32, %c0_i32 : i32
    %c1_i32 = arith.constant 1 : i32
    %32 = arith.select %31, %c1_i32, %c128_i32 : i32
    %33 = vector.broadcast %32 : i32 to vector<1x1024xi32>
    %34 = arith.remsi %30, %33 : vector<1x1024xi32>
    %c0_i32_46 = arith.constant 0 : i32
    %35 = vector.broadcast %c0_i32_46 : i32 to vector<1x1024xi32>
    %36 = arith.cmpi ne, %34, %35 : vector<1x1024xi32>
    %c0_i32_47 = arith.constant 0 : i32
    %37 = vector.broadcast %c0_i32_47 : i32 to vector<1x1024xi32>
    %38 = arith.cmpi slt, %34, %37 : vector<1x1024xi32>
    %c0_i32_48 = arith.constant 0 : i32
    %39 = arith.cmpi slt, %32, %c0_i32_48 : i32
    %40 = vector.broadcast %39 : i1 to vector<1x1024xi1>
    %41 = vector.broadcast %40 : vector<1x1024xi1> to vector<1x1024xi1>
    %42 = arith.xori %38, %41 : vector<1x1024xi1>
    %43 = arith.andi %42, %36 : vector<1x1024xi1>
    %44 = vector.broadcast %32 : i32 to vector<1x1024xi32>
    %45 = arith.addi %34, %44 : vector<1x1024xi32>
    %46 = arith.select %43, %45, %34 : vector<1x1024xi1>, vector<1x1024xi32>
    %c8_i32 = arith.constant 8 : i32
    %47 = vector.broadcast %c8_i32 : i32 to vector<1x1024xi32>
    %48 = arith.cmpi slt, %46, %47 : vector<1x1024xi32>
    %cst_49 = arith.constant 0.000000e+00 : f32
    %49 = vector.shape_cast %48 : vector<1x1024xi1> to vector<1x1024xi1>
    %50 = vector.broadcast %49 : vector<1x1024xi1> to vector<4x1024xi1>
    %51 = vector.broadcast %cst_49 : f32 to vector<4x1024xf32>
    %52 = arith.select %50, %29, %51 : vector<4x1024xi1>, vector<4x1024xf32>
    %53 = arith.truncf %52 : vector<4x1024xf32> to vector<4x1024xbf16>
    %c0_50 = arith.constant 0 : index
    %c0_51 = arith.constant 0 : index
    %c0_52 = arith.constant 0 : index
    %54 = vector.load %arg4[%c0_50, %c0_51, %c0_52] : memref<1x4x1024xbf16, #tpu.memory_space<vmem>>, vector<1x4x1024xbf16>
    %55 = vector.shape_cast %54 : vector<1x4x1024xbf16> to vector<4x1024xbf16>
    %56 = vector.shape_cast %53 : vector<4x1024xbf16> to vector<1x4x1024xbf16>
    tpu.vector_store %arg4[%c0_50, %c0_51, %c0_52], %56 {strides = array<i32>} : memref<1x4x1024xbf16, #tpu.memory_space<vmem>>, vector<1x4x1024xbf16>,
    %cst_53 = arith.constant dense<0.000000e+00> : vector<4xf32>
    %57 = vector.multi_reduction <add>, %52, %cst_53 [1] : vector<4x1024xf32> to vector<4xf32>
    %58 = vector.shape_cast %57 : vector<4xf32> to vector<4x1xf32>
    %59 = arith.mulf %52, %52 : vector<4x1024xf32>
    %cst_54 = arith.constant dense<0.000000e+00> : vector<4xf32>
    %60 = vector.multi_reduction <add>, %59, %cst_54 [1] : vector<4x1024xf32> to vector<4xf32>
    %61 = vector.shape_cast %60 : vector<4xf32> to vector<4x1xf32>
    %62 = tpu.concatenate %58, %61 in 1 : vector<4x1xf32>, vector<4x1xf32> -> vector<4x2xf32>
    %c0_55 = arith.constant 0 : index
    %c0_56 = arith.constant 0 : index
    %c0_57 = arith.constant 0 : index
    %c0_58 = arith.constant 0 : index
    %63 = vector.load %arg5[%c0_55, %c0_56, %c0_57, %c0_58] : memref<1x1x4x2xf32, #tpu.memory_space<vmem>>, vector<1x1x4x2xf32>
    %64 = vector.shape_cast %63 : vector<1x1x4x2xf32> to vector<4x2xf32>
    %65 = vector.shape_cast %62 : vector<4x2xf32> to vector<1x1x4x2xf32>
    tpu.vector_store %arg5[%c0_55, %c0_56, %c0_57, %c0_58], %65 {strides = array<i32>} : memref<1x1x4x2xf32, #tpu.memory_space<vmem>>, vector<1x1x4x2xf32>,
    return
  }
  func.func @transform_0(%arg0: i32, %arg1: i32) -> (i32, i32, i32, i32) {
    %c0_i32 = arith.constant 0 : i32
    %c0_i32_0 = arith.constant 0 : i32
    %c0_i32_1 = arith.constant 0 : i32
    return %arg0, %arg1, %c0_i32, %c0_i32_0 : i32, i32, i32, i32
  }
  func.func @transform_1(%arg0: i32, %arg1: i32) -> (i32, i32) {
    %c0_i32 = arith.constant 0 : i32
    %c0_i32_0 = arith.constant 0 : i32
    %c0_i32_1 = arith.constant 0 : i32
    return %c0_i32, %c0_i32_0 : i32, i32
  }
  func.func @transform_2(%arg0: i32, %arg1: i32) -> (i32, i32, i32) {
    %c0_i32 = arith.constant 0 : i32
    %c0_i32_0 = arith.constant 0 : i32
    return %arg0, %c0_i32, %arg1 : i32, i32, i32
  }
  func.func @transform_3(%arg0: i32, %arg1: i32) -> (i32, i32, i32, i32) {
    %c0_i32 = arith.constant 0 : i32
    %c0_i32_0 = arith.constant 0 : i32
    %c0_i32_1 = arith.constant 0 : i32
    return %arg0, %arg1, %c0_i32, %c0_i32_0 : i32, i32, i32, i32
  }
}

module attributes {stable_mosaic.version = 11 : i64} {
  func.func @_bn_apply_kernel(%arg0: i32, %arg1: i32, %arg2: memref<16x512xbf16, #tpu.memory_space<vmem>>, %arg3: memref<16x1xf32, #tpu.memory_space<vmem>>, %arg4: memref<16x1xf32, #tpu.memory_space<vmem>>, %arg5: memref<16x512xf32, #tpu.memory_space<vmem>>) attributes {dimension_semantics = [#tpu.dimension_semantics<parallel>, #tpu.dimension_semantics<parallel>], iteration_bounds = array<i64: 1, 1>, scalar_prefetch = 0 : i64, scratch_operands = 0 : i64, tpu.core_type = #tpu.core_type<tc>, window_params = [{transform_indices = @transform_0, window_bounds = array<i64: 16, 512>}, {transform_indices = @transform_1, window_bounds = array<i64: 16, 1>}, {transform_indices = @transform_2, window_bounds = array<i64: 16, 1>}, {transform_indices = @transform_3, window_bounds = array<i64: 16, 512>}]} {
    %c0 = arith.constant 0 : index
    %c0_0 = arith.constant 0 : index
    %0 = vector.load %arg2[%c0, %c0_0] : memref<16x512xbf16, #tpu.memory_space<vmem>>, vector<16x512xbf16>
    %1 = arith.extf %0 : vector<16x512xbf16> to vector<16x512xf32>
    %c0_1 = arith.constant 0 : index
    %c0_2 = arith.constant 0 : index
    %2 = vector.load %arg3[%c0_1, %c0_2] : memref<16x1xf32, #tpu.memory_space<vmem>>, vector<16x1xf32>
    %3 = vector.broadcast %2 : vector<16x1xf32> to vector<16x512xf32>
    %4 = arith.mulf %1, %3 : vector<16x512xf32>
    %c0_3 = arith.constant 0 : index
    %c0_4 = arith.constant 0 : index
    %5 = vector.load %arg4[%c0_3, %c0_4] : memref<16x1xf32, #tpu.memory_space<vmem>>, vector<16x1xf32>
    %6 = vector.broadcast %5 : vector<16x1xf32> to vector<16x512xf32>
    %7 = arith.addf %4, %6 : vector<16x512xf32>
    %c0_5 = arith.constant 0 : index
    %c0_6 = arith.constant 0 : index
    %8 = vector.load %arg5[%c0_5, %c0_6] : memref<16x512xf32, #tpu.memory_space<vmem>>, vector<16x512xf32>
    tpu.vector_store %arg5[%c0_5, %c0_6], %7 {strides = array<i32>} : memref<16x512xf32, #tpu.memory_space<vmem>>, vector<16x512xf32>,
    return
  }
  func.func @transform_0(%arg0: i32, %arg1: i32) -> (i32, i32) {
    %c0_i32 = arith.constant 0 : i32
    return %arg0, %arg1 : i32, i32
  }
  func.func @transform_1(%arg0: i32, %arg1: i32) -> (i32, i32) {
    %c0_i32 = arith.constant 0 : i32
    %c0_i32_0 = arith.constant 0 : i32
    return %arg0, %c0_i32 : i32, i32
  }
  func.func @transform_2(%arg0: i32, %arg1: i32) -> (i32, i32) {
    %c0_i32 = arith.constant 0 : i32
    %c0_i32_0 = arith.constant 0 : i32
    return %arg0, %c0_i32 : i32, i32
  }
  func.func @transform_3(%arg0: i32, %arg1: i32) -> (i32, i32) {
    %c0_i32 = arith.constant 0 : i32
    return %arg0, %arg1 : i32, i32
  }
}

module attributes {stable_mosaic.version = 11 : i64} {
  func.func @_conv3x3s2_kernel(%arg0: i32, %arg1: i32, %arg2: memref<1x1x16x768xbf16, #tpu.memory_space<vmem>>, %arg3: memref<8x36xbf16, #tpu.memory_space<vmem>>, %arg4: memref<1x8x512xbf16, #tpu.memory_space<vmem>>, %arg5: memref<1x1x8x2xf32, #tpu.memory_space<vmem>>, %arg6: memref<36x512xbf16, #tpu.memory_space<vmem>>) attributes {dimension_semantics = [#tpu.dimension_semantics<parallel>, #tpu.dimension_semantics<parallel>], iteration_bounds = array<i64: 2, 1>, scalar_prefetch = 0 : i64, scratch_operands = 1 : i64, tpu.core_type = #tpu.core_type<tc>, window_params = [{transform_indices = @transform_0, window_bounds = array<i64: 1, 1, 16, 768>}, {pipeline_mode = #tpu.pipeline_mode<synchronous>, transform_indices = @transform_1, window_bounds = array<i64: 8, 36>}, {transform_indices = @transform_2, window_bounds = array<i64: 1, 8, 512>}, {transform_indices = @transform_3, window_bounds = array<i64: 1, 1, 8, 2>}]} {
    %c0 = arith.constant 0 : index
    %c0_0 = arith.constant 0 : index
    %c0_1 = arith.constant 0 : index
    %c0_2 = arith.constant 0 : index
    %0 = vector.load %arg2[%c0, %c0_0, %c0_1, %c0_2] : memref<1x1x16x768xbf16, #tpu.memory_space<vmem>>, vector<1x1x4x512xbf16>
    %1 = vector.shape_cast %0 : vector<1x1x4x512xbf16> to vector<4x512xbf16>
    %c0_3 = arith.constant 0 : index
    %c0_4 = arith.constant 0 : index
    %2 = vector.load %arg6[%c0_3, %c0_4] : memref<36x512xbf16, #tpu.memory_space<vmem>>, vector<4x512xbf16>
    tpu.vector_store %arg6[%c0_3, %c0_4], %1 {strides = array<i32>} : memref<36x512xbf16, #tpu.memory_space<vmem>>, vector<4x512xbf16>,
    %c0_5 = arith.constant 0 : index
    %c0_6 = arith.constant 0 : index
    %c4 = arith.constant 4 : index
    %c0_7 = arith.constant 0 : index
    %3 = vector.load %arg2[%c0_5, %c0_6, %c4, %c0_7] : memref<1x1x16x768xbf16, #tpu.memory_space<vmem>>, vector<1x1x4x512xbf16>
    %4 = vector.shape_cast %3 : vector<1x1x4x512xbf16> to vector<4x512xbf16>
    %c4_8 = arith.constant 4 : index
    %c0_9 = arith.constant 0 : index
    %5 = vector.load %arg6[%c4_8, %c0_9] : memref<36x512xbf16, #tpu.memory_space<vmem>>, vector<4x512xbf16>
    tpu.vector_store %arg6[%c4_8, %c0_9], %4 {strides = array<i32>} : memref<36x512xbf16, #tpu.memory_space<vmem>>, vector<4x512xbf16>,
    %c0_10 = arith.constant 0 : index
    %c0_11 = arith.constant 0 : index
    %c0_12 = arith.constant 0 : index
    %c1 = arith.constant 1 : index
    %6 = vector.load %arg2[%c0_10, %c0_11, %c0_12, %c1] : memref<1x1x16x768xbf16, #tpu.memory_space<vmem>>, vector<1x1x4x512xbf16>
    %7 = vector.shape_cast %6 : vector<1x1x4x512xbf16> to vector<4x512xbf16>
    %c8 = arith.constant 8 : index
    %c0_13 = arith.constant 0 : index
    %8 = vector.load %arg6[%c8, %c0_13] : memref<36x512xbf16, #tpu.memory_space<vmem>>, vector<4x512xbf16>
    tpu.vector_store %arg6[%c8, %c0_13], %7 {strides = array<i32>} : memref<36x512xbf16, #tpu.memory_space<vmem>>, vector<4x512xbf16>,
    %c0_14 = arith.constant 0 : index
    %c0_15 = arith.constant 0 : index
    %c8_16 = arith.constant 8 : index
    %c0_17 = arith.constant 0 : index
    %9 = vector.load %arg2[%c0_14, %c0_15, %c8_16, %c0_17] : memref<1x1x16x768xbf16, #tpu.memory_space<vmem>>, vector<1x1x4x512xbf16>
    %10 = vector.shape_cast %9 : vector<1x1x4x512xbf16> to vector<4x512xbf16>
    %c12 = arith.constant 12 : index
    %c0_18 = arith.constant 0 : index
    %11 = vector.load %arg6[%c12, %c0_18] : memref<36x512xbf16, #tpu.memory_space<vmem>>, vector<4x512xbf16>
    tpu.vector_store %arg6[%c12, %c0_18], %10 {strides = array<i32>} : memref<36x512xbf16, #tpu.memory_space<vmem>>, vector<4x512xbf16>,
    %c0_19 = arith.constant 0 : index
    %c0_20 = arith.constant 0 : index
    %c12_21 = arith.constant 12 : index
    %c0_22 = arith.constant 0 : index
    %12 = vector.load %arg2[%c0_19, %c0_20, %c12_21, %c0_22] : memref<1x1x16x768xbf16, #tpu.memory_space<vmem>>, vector<1x1x4x512xbf16>
    %13 = vector.shape_cast %12 : vector<1x1x4x512xbf16> to vector<4x512xbf16>
    %c16 = arith.constant 16 : index
    %c0_23 = arith.constant 0 : index
    %14 = vector.load %arg6[%c16, %c0_23] : memref<36x512xbf16, #tpu.memory_space<vmem>>, vector<4x512xbf16>
    tpu.vector_store %arg6[%c16, %c0_23], %13 {strides = array<i32>} : memref<36x512xbf16, #tpu.memory_space<vmem>>, vector<4x512xbf16>,
    %c0_24 = arith.constant 0 : index
    %c0_25 = arith.constant 0 : index
    %c8_26 = arith.constant 8 : index
    %c1_27 = arith.constant 1 : index
    %15 = vector.load %arg2[%c0_24, %c0_25, %c8_26, %c1_27] : memref<1x1x16x768xbf16, #tpu.memory_space<vmem>>, vector<1x1x4x512xbf16>
    %16 = vector.shape_cast %15 : vector<1x1x4x512xbf16> to vector<4x512xbf16>
    %c20 = arith.constant 20 : index
    %c0_28 = arith.constant 0 : index
    %17 = vector.load %arg6[%c20, %c0_28] : memref<36x512xbf16, #tpu.memory_space<vmem>>, vector<4x512xbf16>
    tpu.vector_store %arg6[%c20, %c0_28], %16 {strides = array<i32>} : memref<36x512xbf16, #tpu.memory_space<vmem>>, vector<4x512xbf16>,
    %c0_29 = arith.constant 0 : index
    %c0_30 = arith.constant 0 : index
    %c0_31 = arith.constant 0 : index
    %c128 = arith.constant 128 : index
    %18 = vector.load %arg2[%c0_29, %c0_30, %c0_31, %c128] : memref<1x1x16x768xbf16, #tpu.memory_space<vmem>>, vector<1x1x4x512xbf16>
    %19 = vector.shape_cast %18 : vector<1x1x4x512xbf16> to vector<4x512xbf16>
    %c24 = arith.constant 24 : index
    %c0_32 = arith.constant 0 : index
    %20 = vector.load %arg6[%c24, %c0_32] : memref<36x512xbf16, #tpu.memory_space<vmem>>, vector<4x512xbf16>
    tpu.vector_store %arg6[%c24, %c0_32], %19 {strides = array<i32>} : memref<36x512xbf16, #tpu.memory_space<vmem>>, vector<4x512xbf16>,
    %c0_33 = arith.constant 0 : index
    %c0_34 = arith.constant 0 : index
    %c4_35 = arith.constant 4 : index
    %c128_36 = arith.constant 128 : index
    %21 = vector.load %arg2[%c0_33, %c0_34, %c4_35, %c128_36] : memref<1x1x16x768xbf16, #tpu.memory_space<vmem>>, vector<1x1x4x512xbf16>
    %22 = vector.shape_cast %21 : vector<1x1x4x512xbf16> to vector<4x512xbf16>
    %c28 = arith.constant 28 : index
    %c0_37 = arith.constant 0 : index
    %23 = vector.load %arg6[%c28, %c0_37] : memref<36x512xbf16, #tpu.memory_space<vmem>>, vector<4x512xbf16>
    tpu.vector_store %arg6[%c28, %c0_37], %22 {strides = array<i32>} : memref<36x512xbf16, #tpu.memory_space<vmem>>, vector<4x512xbf16>,
    %c0_38 = arith.constant 0 : index
    %c0_39 = arith.constant 0 : index
    %c0_40 = arith.constant 0 : index
    %c129 = arith.constant 129 : index
    %24 = vector.load %arg2[%c0_38, %c0_39, %c0_40, %c129] : memref<1x1x16x768xbf16, #tpu.memory_space<vmem>>, vector<1x1x4x512xbf16>
    %25 = vector.shape_cast %24 : vector<1x1x4x512xbf16> to vector<4x512xbf16>
    %c32 = arith.constant 32 : index
    %c0_41 = arith.constant 0 : index
    %26 = vector.load %arg6[%c32, %c0_41] : memref<36x512xbf16, #tpu.memory_space<vmem>>, vector<4x512xbf16>
    tpu.vector_store %arg6[%c32, %c0_41], %25 {strides = array<i32>} : memref<36x512xbf16, #tpu.memory_space<vmem>>, vector<4x512xbf16>,
    %c0_42 = arith.constant 0 : index
    %c0_43 = arith.constant 0 : index
    %27 = vector.load %arg3[%c0_42, %c0_43] : memref<8x36xbf16, #tpu.memory_space<vmem>>, vector<8x36xbf16>
    %c0_44 = arith.constant 0 : index
    %c0_45 = arith.constant 0 : index
    %28 = vector.load %arg6[%c0_44, %c0_45] : memref<36x512xbf16, #tpu.memory_space<vmem>>, vector<36x512xbf16>
    %cst = arith.constant dense<0.000000e+00> : vector<8x512xf32>
    %29 = tpu.matmul %27, %28, %cst {dimension_numbers = #tpu.dot_dimension_numbers<[1], [0], [0], [1], [0, 0, 1, 1], [], []>} : vector<8x36xbf16>, vector<36x512xbf16>, vector<8x512xf32> -> vector<8x512xf32>
    %30 = tpu.iota {dimensions = array<i32: 1>} : vector<1x512xi32>
    %c128_i32 = arith.constant 128 : i32
    %c0_i32 = arith.constant 0 : i32
    %31 = arith.cmpi eq, %c128_i32, %c0_i32 : i32
    %c1_i32 = arith.constant 1 : i32
    %32 = arith.select %31, %c1_i32, %c128_i32 : i32
    %33 = vector.broadcast %32 : i32 to vector<1x512xi32>
    %34 = arith.remsi %30, %33 : vector<1x512xi32>
    %c0_i32_46 = arith.constant 0 : i32
    %35 = vector.broadcast %c0_i32_46 : i32 to vector<1x512xi32>
    %36 = arith.cmpi ne, %34, %35 : vector<1x512xi32>
    %c0_i32_47 = arith.constant 0 : i32
    %37 = vector.broadcast %c0_i32_47 : i32 to vector<1x512xi32>
    %38 = arith.cmpi slt, %34, %37 : vector<1x512xi32>
    %c0_i32_48 = arith.constant 0 : i32
    %39 = arith.cmpi slt, %32, %c0_i32_48 : i32
    %40 = vector.broadcast %39 : i1 to vector<1x512xi1>
    %41 = vector.broadcast %40 : vector<1x512xi1> to vector<1x512xi1>
    %42 = arith.xori %38, %41 : vector<1x512xi1>
    %43 = arith.andi %42, %36 : vector<1x512xi1>
    %44 = vector.broadcast %32 : i32 to vector<1x512xi32>
    %45 = arith.addi %34, %44 : vector<1x512xi32>
    %46 = arith.select %43, %45, %34 : vector<1x512xi1>, vector<1x512xi32>
    %c4_i32 = arith.constant 4 : i32
    %47 = vector.broadcast %c4_i32 : i32 to vector<1x512xi32>
    %48 = arith.cmpi slt, %46, %47 : vector<1x512xi32>
    %cst_49 = arith.constant 0.000000e+00 : f32
    %49 = vector.shape_cast %48 : vector<1x512xi1> to vector<1x512xi1>
    %50 = vector.broadcast %49 : vector<1x512xi1> to vector<8x512xi1>
    %51 = vector.broadcast %cst_49 : f32 to vector<8x512xf32>
    %52 = arith.select %50, %29, %51 : vector<8x512xi1>, vector<8x512xf32>
    %53 = arith.truncf %52 : vector<8x512xf32> to vector<8x512xbf16>
    %c0_50 = arith.constant 0 : index
    %c0_51 = arith.constant 0 : index
    %c0_52 = arith.constant 0 : index
    %54 = vector.load %arg4[%c0_50, %c0_51, %c0_52] : memref<1x8x512xbf16, #tpu.memory_space<vmem>>, vector<1x8x512xbf16>
    %55 = vector.shape_cast %54 : vector<1x8x512xbf16> to vector<8x512xbf16>
    %56 = vector.shape_cast %53 : vector<8x512xbf16> to vector<1x8x512xbf16>
    tpu.vector_store %arg4[%c0_50, %c0_51, %c0_52], %56 {strides = array<i32>} : memref<1x8x512xbf16, #tpu.memory_space<vmem>>, vector<1x8x512xbf16>,
    %cst_53 = arith.constant dense<0.000000e+00> : vector<8xf32>
    %57 = vector.multi_reduction <add>, %52, %cst_53 [1] : vector<8x512xf32> to vector<8xf32>
    %58 = vector.shape_cast %57 : vector<8xf32> to vector<8x1xf32>
    %59 = arith.mulf %52, %52 : vector<8x512xf32>
    %cst_54 = arith.constant dense<0.000000e+00> : vector<8xf32>
    %60 = vector.multi_reduction <add>, %59, %cst_54 [1] : vector<8x512xf32> to vector<8xf32>
    %61 = vector.shape_cast %60 : vector<8xf32> to vector<8x1xf32>
    %62 = tpu.concatenate %58, %61 in 1 : vector<8x1xf32>, vector<8x1xf32> -> vector<8x2xf32>
    %c0_55 = arith.constant 0 : index
    %c0_56 = arith.constant 0 : index
    %c0_57 = arith.constant 0 : index
    %c0_58 = arith.constant 0 : index
    %63 = vector.load %arg5[%c0_55, %c0_56, %c0_57, %c0_58] : memref<1x1x8x2xf32, #tpu.memory_space<vmem>>, vector<1x1x8x2xf32>
    %64 = vector.shape_cast %63 : vector<1x1x8x2xf32> to vector<8x2xf32>
    %65 = vector.shape_cast %62 : vector<8x2xf32> to vector<1x1x8x2xf32>
    tpu.vector_store %arg5[%c0_55, %c0_56, %c0_57, %c0_58], %65 {strides = array<i32>} : memref<1x1x8x2xf32, #tpu.memory_space<vmem>>, vector<1x1x8x2xf32>,
    return
  }
  func.func @transform_0(%arg0: i32, %arg1: i32) -> (i32, i32, i32, i32) {
    %c0_i32 = arith.constant 0 : i32
    %c0_i32_0 = arith.constant 0 : i32
    %c0_i32_1 = arith.constant 0 : i32
    return %arg0, %arg1, %c0_i32, %c0_i32_0 : i32, i32, i32, i32
  }
  func.func @transform_1(%arg0: i32, %arg1: i32) -> (i32, i32) {
    %c0_i32 = arith.constant 0 : i32
    %c0_i32_0 = arith.constant 0 : i32
    %c0_i32_1 = arith.constant 0 : i32
    return %c0_i32, %c0_i32_0 : i32, i32
  }
  func.func @transform_2(%arg0: i32, %arg1: i32) -> (i32, i32, i32) {
    %c0_i32 = arith.constant 0 : i32
    %c0_i32_0 = arith.constant 0 : i32
    return %arg0, %c0_i32, %arg1 : i32, i32, i32
  }
  func.func @transform_3(%arg0: i32, %arg1: i32) -> (i32, i32, i32, i32) {
    %c0_i32 = arith.constant 0 : i32
    %c0_i32_0 = arith.constant 0 : i32
    %c0_i32_1 = arith.constant 0 : i32
    return %arg0, %arg1, %c0_i32, %c0_i32_0 : i32, i32, i32, i32
  }
}

</mosaic_0001>

<llo_original>
// kernel: down_sampling_stage1_forward.5
$region0: #{down_sampling_stage1_forward.5}
  #allocation0 [shape = 'u32[]', space=smem, size = 0x4, offset = 0x4, fixed_abs, tag = 'smem constant byte address 0x4 - core index']
  #allocation1 [shape = 'u32[72,128]{1,0:T(1,128)}', space=vmem, size = 0x9000, scoped, tag = 'internal scratch']
  %s0 = inlined_call_operand.vmem [shape: bf16[16,512], index: 0, kind: input, shape index: {}]
  %s1 = inlined_call_operand.vmem [shape: f32[16,1], index: 1, kind: input, shape index: {}]
  %s2 = inlined_call_operand.vmem [shape: f32[16,1], index: 2, kind: input, shape index: {}]
  %s3 = inlined_call_operand.vmem [shape: f32[16,512], index: 3, kind: output, shape index: {}]
  %s4 = sld [smem:[#allocation0]]
  $region22: #{down_sampling_stage1_forward.5} parent=0
    _
  %s6 = ssub.s32 1, %s4
  %s7 = scalar_select 0, %s6, %s4
  // Predicated region
  $region2: #{down_sampling_stage1_forward.5} parent=0 // pred_check
    _
  $region3: #{down_sampling_stage1_forward.5} parent=0 // pred_check_branch
    %9 = sbr.rel (0) target = $region5
  $region4: #{down_sampling_stage1_forward.5} parent=0 // pred_region
    _
  $region5: #{down_sampling_stage1_forward.5} parent=0 // pred_fallthru
    _
  // Predicated region
  $region6: #{down_sampling_stage1_forward.5} parent=0 // pred_check
    _
  $region7: #{down_sampling_stage1_forward.5} parent=0 // pred_check_branch
    %11 = sbr.rel (0) target = $region9
  $region8: #{down_sampling_stage1_forward.5} parent=0 // pred_region
    _
  $region9: #{down_sampling_stage1_forward.5} parent=0 // pred_fallthru
    _
  // Predicated region
  $region10: #{down_sampling_stage1_forward.5} parent=0 // pred_check
    _
  $region11: #{down_sampling_stage1_forward.5} parent=0 // pred_check_branch
    %13 = sbr.rel (0) target = $region13
  $region12: #{down_sampling_stage1_forward.5} parent=0 // pred_region
    _
  $region13: #{down_sampling_stage1_forward.5} parent=0 // pred_fallthru
    _
  %v14 = vld [vmem:[%s0] sm:$0xff]
  %v15 = vld [vmem:[%s0 + $0x8] sm:$0xff]
  %v16 = vld [vmem:[%s0 + $0x10] sm:$0xff]
  %v17 = vld [vmem:[%s0 + $0x18] sm:$0xff]
  %v18 = vunpack.c.l.bf16 %v14
  %v19 = vunpack.c.h.bf16 %v14
  %v20 = vunpack.c.l.bf16 %v15
  %v21 = vunpack.c.h.bf16 %v15
  %v22 = vunpack.c.l.bf16 %v16
  %v23 = vunpack.c.h.bf16 %v16
  %v24 = vunpack.c.l.bf16 %v17
  %v25 = vunpack.c.h.bf16 %v17
  %v26 = vld [vmem:[%s1] sm:$0xff]
  %v27 = vld [vmem:[%s1 + $0x8] sm:$0xff]
  %29 = vset.pattern.permute.xlu0 0
  %30 = vperm.xlu0 %29, %v26
  %v31 = vpop.permute.xlu0 %30
  %34 = vset.pattern.permute.xlu0 0
  %35 = vperm.xlu0 %34, %v27
  %v36 = vpop.permute.xlu0 %35
  %v38 = vmul.f32 %v18, %v31
  %v39 = vmul.f32 %v19, %v31
  %v40 = vmul.f32 %v20, %v31
  %v41 = vmul.f32 %v21, %v31
  %v42 = vmul.f32 %v22, %v36
  %v43 = vmul.f32 %v23, %v36
  %v44 = vmul.f32 %v24, %v36
  %v45 = vmul.f32 %v25, %v36
  %v46 = vld [vmem:[%s2] sm:$0xff]
  %v47 = vld [vmem:[%s2 + $0x8] sm:$0xff]
  %49 = vset.pattern.permute.xlu0 0
  %50 = vperm.xlu0 %49, %v46
  %v51 = vpop.permute.xlu0 %50
  %54 = vset.pattern.permute.xlu0 0
  %55 = vperm.xlu0 %54, %v47
  %v56 = vpop.permute.xlu0 %55
  %v58 = vadd.f32 %v38, %v51
  %v59 = vadd.f32 %v39, %v51
  %v60 = vadd.f32 %v40, %v51
  %v61 = vadd.f32 %v41, %v51
  %v62 = vadd.f32 %v42, %v56
  %v63 = vadd.f32 %v43, %v56
  %v64 = vadd.f32 %v44, %v56
  %v65 = vadd.f32 %v45, %v56
  %66 = vst [vmem:[%s3] sm:$0xff] %v58
  %67 = vst [vmem:[%s3 + $0x8] sm:$0xff] %v59
  %68 = vst [vmem:[%s3 + $0x10] sm:$0xff] %v60
  %69 = vst [vmem:[%s3 + $0x18] sm:$0xff] %v61
  %70 = vst [vmem:[%s3 + $0x20] sm:$0xff] %v62
  %71 = vst [vmem:[%s3 + $0x28] sm:$0xff] %v63
  %72 = vst [vmem:[%s3 + $0x30] sm:$0xff] %v64
  %73 = vst [vmem:[%s3 + $0x38] sm:$0xff] %v65
  // Predicated region
  $region14: #{down_sampling_stage1_forward.5} parent=0 // pred_check
    _
  $region15: #{down_sampling_stage1_forward.5} parent=0 // pred_check_branch
    %75 = sbr.rel (0) target = $region17
  $region16: #{down_sampling_stage1_forward.5} parent=0 // pred_region
    _
  $region17: #{down_sampling_stage1_forward.5} parent=0 // pred_fallthru
    _
  // Predicated region
  $region18: #{down_sampling_stage1_forward.5} parent=0 // pred_check
    _
  $region19: #{down_sampling_stage1_forward.5} parent=0 // pred_check_branch
    %77 = sbr.rel (0) target = $region21
  $region20: #{down_sampling_stage1_forward.5} parent=0 // pred_region
    _
  $region21: #{down_sampling_stage1_forward.5} parent=0 // pred_fallthru
    _

// kernel: down_sampling_stage1_forward.4
$region0: #{down_sampling_stage1_forward.4}
  #allocation0 [shape = 'u32[]', space=smem, size = 0x4, offset = 0x4, fixed_abs, tag = 'smem constant byte address 0x4 - core index']
  #allocation1 [shape = 'u32[72,128]{1,0:T(1,128)}', space=vmem, size = 0x9000, scoped, tag = 'internal scratch']
  #allocation2 [shape = 'bf16[36,512]{1,0:T(8,128)(2,1)}', space=vmem, size = 0xa000, scoped, tag = 'scratch operand']
  %s0 = inlined_call_operand.vmem [shape: bf16[2,1,16,768], index: 0, kind: input, shape index: {}]
  %s1 = inlined_call_operand.vmem [shape: bf16[8,36], index: 1, kind: input, shape index: {}]
  %s2 = inlined_call_operand.vmem [shape: bf16[2,8,512], index: 2, kind: output, shape index: {0}]
  %s3 = inlined_call_operand.vmem [shape: f32[2,1,8,2], index: 3, kind: output, shape index: {1}]
  %4 = xla_tuple %s2, %s3
  %s5 = sld [smem:[#allocation0]]
  $region49: #{down_sampling_stage1_forward.4} parent=0
    _
  %s7 = ssub.s32 1, %s5
  %s8 = scalar_select 0, %s7, %s5
  loop: start=0, step=1, limit=4
  $region2: #{down_sampling_stage1_forward.4} parent=0 // loop_pre_header
    _
  $region3: #{down_sampling_stage1_forward.4} parent=0 // loop_header
    %s10 = sphi 0, %s14
    %p11 = scmp.ge.s32.totalorder %s10, 4
    %s17 = sphi 0, %s29
    %s18 = sphi 0, %s25
    %s19 = sphi 0, %s17
    %s20 = sphi 0, %s18
    %s21 = sphi 0, %s19
    %s22 = sphi 0, %s20
    %s34 = sphi 0, %s36
    %s37 = sphi 0, %s34
    %s38 = sphi 0, %s37
    %s54 = sphi 0, %s38
    %s58 = sphi 0, %s58
    %s60 = sphi 0, %s58
    %s61 = sphi 0, %s60
    %s75 = sphi 0, %s61
    %s83 = sphi 0, %s85
    %s86 = sphi 0, %s83
    %s87 = sphi 0, %s86
    %s103 = sphi 0, %s87
    %s111 = sphi 0, %s113
    %s114 = sphi 0, %s111
    %s115 = sphi 0, %s114
    %s131 = sphi 0, %s115
  $region4: #{down_sampling_stage1_forward.4} parent=0 // loop_header_branch
    %13 = sbr.rel (%p11) target = $region8
  $region5: #{down_sampling_stage1_forward.4} parent=0 // loop_body
    %s15 = ssub.s32 %s10, 1
    %s16 = ssub.s32 %s10, 2
    %s23 = sadd.s32 1, %s18
    %p24 = scmp.ge.s32.totalorder %s23, 1
    %s25 = scalar_select %p24, 0, %s23
    %s26 = sadd.s32 1, %s17
    %s27 = scalar_select %p24, %s26, %s17
    %p28 = scmp.ge.s32.totalorder %s27, 2
    %s29 = scalar_select %p28, 0, %s27
    %s30 = ssub.s32 %s17, %s29
    %s31 = ssub.s32 %s18, %s25
    %s32 = sor.u32 %s30, %s31
    %p33 = scmp.eq.s32.totalorder %s32, 0
    %s35 = sadd.s32 %s34, 1
    %s36 = scalar_select %p33, %s34, %s35
    %p39 = pneg %p33
    %p40 = scmp.eq.s32.totalorder %s10, 1
    %p41 = por %p39, %p40
    %p42 = scmp.ne.s32.totalorder %s34, %s37
    %p43 = scmp.eq.s32.totalorder %s10, 0
    %p44 = por %p42, %p43
    %p45 = scmp.ne.s32.totalorder %s34, %s37
    %p46 = scmp.eq.s32.totalorder %s15, 1
    %p47 = por %p45, %p46
    %p48 = scmp.ne.s32.totalorder %s37, %s38
    %p49 = scmp.eq.s32.totalorder %s15, 0
    %p50 = por %p48, %p49
    %p51 = scmp.ne.s32.totalorder %s37, %s38
    %p52 = scmp.eq.s32.totalorder %s16, 1
    %p53 = por %p51, %p52
    %p55 = scmp.ne.s32.totalorder %s38, %s54
    %p56 = scmp.eq.s32.totalorder %s16, 0
    %p57 = por %p55, %p56
    %s59 = sadd.s32 %s58, 1
    %p62 = scmp.eq.s32.totalorder %s10, 1
    %p63 = scmp.ne.s32.totalorder %s58, %s60
    %p64 = scmp.eq.s32.totalorder %s10, 0
    %p65 = por %p63, %p64
    %p66 = scmp.ne.s32.totalorder %s58, %s60
    %p67 = scmp.eq.s32.totalorder %s15, 1
    %p68 = por %p66, %p67
    %p69 = scmp.ne.s32.totalorder %s60, %s61
    %p70 = scmp.eq.s32.totalorder %s15, 0
    %p71 = por %p69, %p70
    %p72 = scmp.ne.s32.totalorder %s60, %s61
    %p73 = scmp.eq.s32.totalorder %s16, 1
    %p74 = por %p72, %p73
    %p76 = scmp.ne.s32.totalorder %s61, %s75
    %p77 = scmp.eq.s32.totalorder %s16, 0
    %p78 = por %p76, %p77
    %s79 = ssub.s32 %s17, %s29
    %s80 = ssub.s32 %s18, %s25
    %s81 = sor.u32 %s79, %s80
    %p82 = scmp.eq.s32.totalorder %s81, 0
    %s84 = sadd.s32 %s83, 1
    %s85 = scalar_select %p82, %s83, %s84
    %p88 = pneg %p82
    %p89 = scmp.eq.s32.totalorder %s10, 1
    %p90 = por %p88, %p89
    %p91 = scmp.ne.s32.totalorder %s83, %s86
    %p92 = scmp.eq.s32.totalorder %s10, 0
    %p93 = por %p91, %p92
    %p94 = scmp.ne.s32.totalorder %s83, %s86
    %p95 = scmp.eq.s32.totalorder %s15, 1
    %p96 = por %p94, %p95
    %p97 = scmp.ne.s32.totalorder %s86, %s87
    %p98 = scmp.eq.s32.totalorder %s15, 0
    %p99 = por %p97, %p98
    %p100 = scmp.ne.s32.totalorder %s86, %s87
    %p101 = scmp.eq.s32.totalorder %s16, 1
    %p102 = por %p100, %p101
    %p104 = scmp.ne.s32.totalorder %s87, %s103
    %p105 = scmp.eq.s32.totalorder %s16, 0
    %p106 = por %p104, %p105
    %s107 = ssub.s32 %s17, %s29
    %s108 = ssub.s32 %s18, %s25
    %s109 = sor.u32 %s107, %s108
    %p110 = scmp.eq.s32.totalorder %s109, 0
    %s112 = sadd.s32 %s111, 1
    %s113 = scalar_select %p110, %s111, %s112
    %p116 = pneg %p110
    %p117 = scmp.eq.s32.totalorder %s10, 1
    %p118 = por %p116, %p117
    %p119 = scmp.ne.s32.totalorder %s111, %s114
    %p120 = scmp.eq.s32.totalorder %s10, 0
    %p121 = por %p119, %p120
    %p122 = scmp.ne.s32.totalorder %s111, %s114
    %p123 = scmp.eq.s32.totalorder %s15, 1
    %p124 = por %p122, %p123
    %p125 = scmp.ne.s32.totalorder %s114, %s115
    %p126 = scmp.eq.s32.totalorder %s15, 0
    %p127 = por %p125, %p126
    %p128 = scmp.ne.s32.totalorder %s114, %s115
    %p129 = scmp.eq.s32.totalorder %s16, 1
    %p130 = por %p128, %p129
    %p132 = scmp.ne.s32.totalorder %s115, %s131
    %p133 = scmp.eq.s32.totalorder %s16, 0
    %p134 = por %p132, %p133
    %p135 = scmp.le.s32.totalorder 1, %s10
    %p136 = scmp.lt.s32.totalorder %s10, 3
    %p137 = pnand %p135, %p136
    %p138 = pneg %p137
    // Predicated region
    $region9: #{down_sampling_stage1_forward.4} parent=5 // pred_check
      _
    $region10: #{down_sampling_stage1_forward.4} parent=5 // pred_check_branch
      %140 = sbr.rel (%p137) target = $region12
    $region11: #{down_sampling_stage1_forward.4} parent=5 // pred_region
      %s141 = ssub.s32 %s10, 1
      // Predicated region
      $region13: #{down_sampling_stage1_forward.4} parent=11 // pred_check
        %p142 = pneg %p71
      $region14: #{down_sampling_stage1_forward.4} parent=11 // pred_check_branch
        %144 = sbr.rel (%p142) target = $region16
      $region15: #{down_sampling_stage1_forward.4} parent=11 // pred_region
        _
      $region16: #{down_sampling_stage1_forward.4} parent=11 // pred_fallthru
        _
    $region12: #{down_sampling_stage1_forward.4} parent=5 // pred_fallthru
      _
    %p145 = scmp.lt.s32.totalorder %s10, 2
    // Predicated region
    $region17: #{down_sampling_stage1_forward.4} parent=5 // pred_check
      %p146 = pneg %p145
    $region18: #{down_sampling_stage1_forward.4} parent=5 // pred_check_branch
      %148 = sbr.rel (%p146) target = $region20
    $region19: #{down_sampling_stage1_forward.4} parent=5 // pred_region
      // Predicated region
      $region21: #{down_sampling_stage1_forward.4} parent=19 // pred_check
        %p149 = pneg %p44
      $region22: #{down_sampling_stage1_forward.4} parent=19 // pred_check_branch
        %151 = sbr.rel (%p149) target = $region24
      $region23: #{down_sampling_stage1_forward.4} parent=19 // pred_region
        %p152 = scmp.lt.s32.totalorder %s17, 1
        %s153 = scalar_select %p152, %s17, 1
        %p154 = scmp.lt.s32.totalorder %s18, 0
        %s155 = scalar_select %p154, %s18, 0
        %s156 = smul.addr %s155, 12
        %s157 = smul.addr %s153, 12
        %s158 = sadd.s32 %s156, %s157
        %s159 = smul.addr %s158, 4
        %s160 = scalar_lea.vmem %s0, %s159
      $region24: #{down_sampling_stage1_forward.4} parent=19 // pred_fallthru
        _
    $region20: #{down_sampling_stage1_forward.4} parent=5 // pred_fallthru
      _
    %p161 = scmp.le.s32.totalorder 1, %s10
    %p162 = scmp.lt.s32.totalorder %s10, 3
    %p163 = pnand %p161, %p162
    %p164 = pneg %p163
    // Predicated region
    $region25: #{down_sampling_stage1_forward.4} parent=5 // pred_check
      _
    $region26: #{down_sampling_stage1_forward.4} parent=5 // pred_check_branch
      %166 = sbr.rel (%p163) target = $region28
    $region27: #{down_sampling_stage1_forward.4} parent=5 // pred_region
      %s167 = ssub.s32 %s10, 1
      %p168 = scmp.lt.s32.totalorder %s19, 1
      %s169 = scalar_select %p168, %s19, 1
      %p170 = scmp.lt.s32.totalorder %s20, 0
      %s171 = scalar_select %p170, %s20, 0
      %s172 = smul.addr %s171, 12
      %s173 = smul.addr %s169, 12
      %s174 = sadd.s32 %s172, %s173
      %s175 = smul.addr %s174, 4
      %s176 = scalar_lea.vmem %s0, %s175
      %p177 = pneg %p50
      %p178 = pneg %p47
      %p179 = pneg %p71
      %p180 = pneg %p68
      %p181 = pneg %p99
      %p182 = pneg %p96
      %s183 = smul.u32 4, %s20
      %p184 = scmp.lt.s32.totalorder %s19, 1
      %s185 = scalar_select %p184, %s19, 1
      %p186 = scmp.lt.s32.totalorder %s183, 3
      %s187 = scalar_select %p186, %s183, 3
      %s188 = smul.addr %s185, 4
      %s189 = sadd.s32 %s187, %s188
      %s190 = smul.addr %s189, 4
      %s191 = scalar_lea.vmem %s2, %s190
      %p192 = pneg %p127
      %p193 = pneg %p124
      %p194 = scmp.lt.s32.totalorder %s19, 1
      %s195 = scalar_select %p194, %s19, 1
      %p196 = scmp.lt.s32.totalorder %s20, 0
      %s197 = scalar_select %p196, %s20, 0
      %s198 = sadd.s32 %s197, %s195
      %s199 = smul.addr %s198, 8
      %s200 = scalar_lea.vmem %s3, %s199
      %p201 = scmp.lt.s32.totalorder %s19, 1
      %s202 = scalar_select %p201, %s19, 1
      %p203 = scmp.lt.s32.totalorder %s20, 0
      %s204 = scalar_select %p203, %s20, 0
      %s205 = smul.addr %s204, 12
      %s206 = smul.addr %s202, 12
      %s207 = sadd.s32 %s205, %s206
      %s208 = smul.addr %s207, 4
      %s209 = scalar_lea.vmem %s0, %s208
      %s210 = smul.u32 4, %s20
      %p211 = scmp.lt.s32.totalorder %s19, 1
      %s212 = scalar_select %p211, %s19, 1
      %p213 = scmp.lt.s32.totalorder %s210, 3
      %s214 = scalar_select %p213, %s210, 3
      %s215 = smul.addr %s212, 4
      %s216 = sadd.s32 %s214, %s215
      %s217 = smul.addr %s216, 4
      %s218 = scalar_lea.vmem %s2, %s217
      %s219 = smul.u32 4, %s20
      %p220 = scmp.lt.s32.totalorder %s19, 1
      %s221 = scalar_select %p220, %s19, 1
      %p222 = scmp.lt.s32.totalorder %s20, 0
      %s223 = scalar_select %p222, %s20, 0
      %s224 = sadd.s32 %s223, %s221
      %s225 = smul.addr %s224, 8
      %s226 = scalar_lea.vmem %s3, %s225
      %v228 = vld [vmem:[%s209] sm:$0x33]
      %v229 = vld [vmem:[%s209 + $0x8] sm:$0x33]
      %230 = vst [vmem:[#allocation2] sm:$0x33] %v228
      %231 = vst [vmem:[#allocation2 + $0x8] sm:$0x33] %v229
      %v232 = vld [vmem:[%s209] sm:$0xcc]
      %v233 = vld [vmem:[%s209 + $0x8] sm:$0xcc]
      %234 = vst [vmem:[#allocation2] sm:$0xcc] %v232
      %235 = vst [vmem:[#allocation2 + $0x8] sm:$0xcc] %v233
      %v236 = vld [vmem:[%s209] sm:$0x33]
      %v237 = vld [vmem:[%s209 + $0x8] sm:$0x33]
      %v238 = vld [vmem:[%s209 + $0x10] sm:$0x3]
      %242 = vrot.lane.b32.xlu0 %v236, 127
      %v243 = vpop.permute.xlu0 %242
      %244 = vrot.lane.b32.xlu0 %v237, 127
      %v245 = vpop.permute.xlu0 %244
      %246 = vrot.lane.b32.xlu0 %v238, 127
      %v247 = vpop.permute.xlu0 %246
      %v248 = vrot.slane %v243, 4
      %v249 = vrot.slane %v245, 4
      %v250 = vrot.slane %v247, 4
      %vm251 = vcmask 1043456
      %v252 = vsel %vm251, %v248, %v249
      %vm253 = vcmask 1039360
      %v254 = vsel %vm253, %v243, %v252
      %v255 = vsel %vm251, %v249, %v250
      %v256 = vsel %vm253, %v245, %v255
      %259 = vst [vmem:[#allocation2 + $0x10] sm:$0x33] %v254
      %260 = vst [vmem:[#allocation2 + $0x18] sm:$0x33] %v256
      %v261 = vld [vmem:[%s209 + $0x18] sm:$0x33]
      %v262 = vld [vmem:[%s209 + $0x20] sm:$0x33]
      %v265 = vrot.slane %v261, 6
      %v266 = vrot.slane %v262, 6
      %269 = vst [vmem:[#allocation2 + $0x10] sm:$0xcc] %v265
      %270 = vst [vmem:[#allocation2 + $0x18] sm:$0xcc] %v266
      %v271 = vld [vmem:[%s209 + $0x18] sm:$0xcc]
      %v272 = vld [vmem:[%s209 + $0x20] sm:$0xcc]
      %v275 = vrot.slane %v271, 6
      %v276 = vrot.slane %v275, 4
      %v277 = vrot.slane %v272, 6
      %v278 = vrot.slane %v277, 4
      %281 = vst [vmem:[#allocation2 + $0x20] sm:$0x33] %v276
      %282 = vst [vmem:[#allocation2 + $0x28] sm:$0x33] %v278
      %v283 = vld [vmem:[%s209 + $0x18] sm:$0x33]
      %v284 = vld [vmem:[%s209 + $0x20] sm:$0x33]
      %v285 = vld [vmem:[%s209 + $0x28] sm:$0x3]
      %v289 = vrot.slane %v283, 6
      %v290 = vrot.slane %v284, 6
      %v291 = vrot.slane %v285, 6
      %292 = vrot.lane.b32.xlu0 %v289, 127
      %v293 = vpop.permute.xlu0 %292
      %294 = vrot.lane.b32.xlu0 %v290, 127
      %v295 = vpop.permute.xlu0 %294
      %296 = vrot.lane.b32.xlu0 %v291, 127
      %v297 = vpop.permute.xlu0 %296
      %v298 = vrot.slane %v293, 4
      %v299 = vrot.slane %v295, 4
      %v300 = vrot.slane %v297, 4
      %v301 = vsel %vm251, %v298, %v299
      %v302 = vsel %vm253, %v293, %v301
      %v303 = vsel %vm251, %v299, %v300
      %v304 = vsel %vm253, %v295, %v303
      %307 = vst [vmem:[#allocation2 + $0x20] sm:$0xcc] %v302
      %308 = vst [vmem:[#allocation2 + $0x28] sm:$0xcc] %v304
      %v309 = vld [vmem:[%s209 + $0x4] sm:$0x33]
      %v310 = vld [vmem:[%s209 + $0xc] sm:$0x33]
      %311 = vst [vmem:[#allocation2 + $0x30] sm:$0x33] %v309
      %312 = vst [vmem:[#allocation2 + $0x38] sm:$0x33] %v310
      %v313 = vld [vmem:[%s209 + $0x4] sm:$0xcc]
      %v314 = vld [vmem:[%s209 + $0xc] sm:$0xcc]
      %315 = vst [vmem:[#allocation2 + $0x30] sm:$0xcc] %v313
      %316 = vst [vmem:[#allocation2 + $0x38] sm:$0xcc] %v314
      %v317 = vld [vmem:[%s209 + $0x4] sm:$0x33]
      %v318 = vld [vmem:[%s209 + $0xc] sm:$0x33]
      %v319 = vld [vmem:[%s209 + $0x14] sm:$0x3]
      %323 = vrot.lane.b32.xlu0 %v317, 127
      %v324 = vpop.permute.xlu0 %323
      %325 = vrot.lane.b32.xlu0 %v318, 127
      %v326 = vpop.permute.xlu0 %325
      %327 = vrot.lane.b32.xlu0 %v319, 127
      %v328 = vpop.permute.xlu0 %327
      %v329 = vrot.slane %v324, 4
      %v330 = vrot.slane %v326, 4
      %v331 = vrot.slane %v328, 4
      %v332 = vsel %vm251, %v329, %v330
      %v333 = vsel %vm253, %v324, %v332
      %v334 = vsel %vm251, %v330, %v331
      %v335 = vsel %vm253, %v326, %v334
      %338 = vst [vmem:[#allocation2 + $0x40] sm:$0x33] %v333
      %339 = vst [vmem:[#allocation2 + $0x48] sm:$0x33] %v335
      %v340 = vld [vmem:[%s1] sm:$0xf]
      %v341 = vld [vmem:[#allocation2] sm:$0xff]
      %v342 = vld [vmem:[#allocation2 + $0x8] sm:$0xff]
      %v343 = vld [vmem:[#allocation2 + $0x10] sm:$0xff]
      %v344 = vld [vmem:[#allocation2 + $0x18] sm:$0xff]
      %v345 = vld [vmem:[#allocation2 + $0x20] sm:$0xff]
      %v346 = vld [vmem:[#allocation2 + $0x28] sm:$0xff]
      %v347 = vld [vmem:[#allocation2 + $0x30] sm:$0xff]
      %v348 = vld [vmem:[#allocation2 + $0x38] sm:$0xff]
      %v349 = vld [vmem:[#allocation2 + $0x40] sm:$0x33]
      %v350 = vld [vmem:[#allocation2 + $0x48] sm:$0x33]
      %v361 = vunpack.c.l.b16 %v341
      %v362 = vunpack.c.h.b16 %v341
      %v363 = vunpack.c.l.b16 %v342
      %v364 = vunpack.c.h.b16 %v342
      %v365 = vunpack.c.l.b16 %v343
      %v366 = vunpack.c.h.b16 %v343
      %v367 = vunpack.c.l.b16 %v344
      %v368 = vunpack.c.h.b16 %v344
      %v369 = vunpack.c.l.b16 %v345
      %v370 = vunpack.c.h.b16 %v345
      %v371 = vunpack.c.l.b16 %v346
      %v372 = vunpack.c.h.b16 %v346
      %v373 = vunpack.c.l.b16 %v347
      %v374 = vunpack.c.h.b16 %v347
      %v375 = vunpack.c.l.b16 %v348
      %v376 = vunpack.c.h.b16 %v348
      %v377 = vunpack.c.l.b16 %v349
      %v378 = vunpack.c.h.b16 %v349
      %v379 = vunpack.c.l.b16 %v350
      %v380 = vunpack.c.h.b16 %v350
      %v381 = vpack.c.b16 %v365, %v361
      %v382 = vpack.c.b16 %v366, %v362
      %v383 = vpack.c.b16 %v367, %v363
      %v384 = vpack.c.b16 %v368, %v364
      %v385 = vpack.c.b16 %v373, %v369
      %v386 = vpack.c.b16 %v374, %v370
      %v387 = vpack.c.b16 %v375, %v371
      %v388 = vpack.c.b16 %v376, %v372
      %v389 = vpack.c.b16 %v377, %v377
      %v390 = vpack.c.b16 %v378, %v378
      %v391 = vpack.c.b16 %v379, %v379
      %v392 = vpack.c.b16 %v380, %v380
      %vm401 = vcmask 293888
      %v403 = vsel %vm401, %v340, 0
      %vm405 = vcmask 1041408
      %v407 = vsel %vm405, %v389, 0
      %v410 = vsel %vm405, %v390, 0
      %v413 = vsel %vm405, %v391, 0
      %v416 = vsel %vm405, %v392, 0
      %418 = vmatpush.bf16.msra.mxu0 0
      %419 = vmatpush.bf16.msra.mxu0 0
      %420 = vmatpush.bf16.msra.mxu0 0
      %421 = vmatpush.bf16.msra.mxu0 0
      %422 = vmatpush.bf16.msra.mxu0 0
      %423 = vmatpush.bf16.msra.mxu0 %v407
      %424 = vmatpush.bf16.msra.mxu0 %v385
      %425 = vmatpush.bf16.msra.mxu0 %v381
      %426 = vmatmul.bf16.gmra.mxu0 %v403
      %v427 = vpop.f32.mrf.mxu0
      %v428 = vadd.f32 0.0, %v427
      %v429 = vpop.f32.mrf.mxu0
      %430 = vdwg.mxu0
      %431 = vmatpush.bf16.msra.mxu0 0
      %432 = vmatpush.bf16.msra.mxu0 0
      %433 = vmatpush.bf16.msra.mxu0 0
      %434 = vmatpush.bf16.msra.mxu0 0
      %435 = vmatpush.bf16.msra.mxu0 0
      %436 = vmatpush.bf16.msra.mxu0 %v410
      %437 = vmatpush.bf16.msra.mxu0 %v386
      %438 = vmatpush.bf16.msra.mxu0 %v382
      %439 = vmatmul.bf16.gmra.mxu0 %v403
      %v440 = vpop.f32.mrf.mxu0
      %v441 = vadd.f32 0.0, %v440
      %v442 = vpop.f32.mrf.mxu0
      %443 = vdwg.mxu0
      %444 = vmatpush.bf16.msra.mxu0 0
      %445 = vmatpush.bf16.msra.mxu0 0
      %446 = vmatpush.bf16.msra.mxu0 0
      %447 = vmatpush.bf16.msra.mxu0 0
      %448 = vmatpush.bf16.msra.mxu0 0
      %449 = vmatpush.bf16.msra.mxu0 %v413
      %450 = vmatpush.bf16.msra.mxu0 %v387
      %451 = vmatpush.bf16.msra.mxu0 %v383
      %452 = vmatmul.bf16.gmra.mxu0 %v403
      %v453 = vpop.f32.mrf.mxu0
      %v454 = vadd.f32 0.0, %v453
      %v455 = vpop.f32.mrf.mxu0
      %456 = vdwg.mxu0
      %457 = vmatpush.bf16.msra.mxu0 0
      %458 = vmatpush.bf16.msra.mxu0 0
      %459 = vmatpush.bf16.msra.mxu0 0
      %460 = vmatpush.bf16.msra.mxu0 0
      %461 = vmatpush.bf16.msra.mxu0 0
      %462 = vmatpush.bf16.msra.mxu0 %v416
      %463 = vmatpush.bf16.msra.mxu0 %v388
      %464 = vmatpush.bf16.msra.mxu0 %v384
      %465 = vmatmul.bf16.gmra.mxu0 %v403
      %v466 = vpop.f32.mrf.mxu0
      %v467 = vadd.f32 0.0, %v466
      %v468 = vpop.f32.mrf.mxu0
      %469 = vdwg.mxu0
      %v470 = vlaneseq
      %v471 = vand.u32 %v470, 127
      %v472 = vadd.s32 %v471, 128
      %v473 = vadd.s32 %v471, 256
      %v474 = vadd.s32 %v471, 384
      %vm475 = vcmp.lt.s32.totalorder %v471, 0
      %v476 = vsub.s32 0, %v471
      %v477 = vsel %vm475, %v476, %v471
      %v478 = vshrl.u32 %v477, 7
      %v479 = vand.u32 %v477, 127
      %v480 = vsub.s32 0, %v479
      %v481 = vsel %vm475, %v480, %v479
      %vm482 = vcmp.lt.s32.totalorder %v472, 0
      %v483 = vsub.s32 0, %v472
      %v484 = vsel %vm482, %v483, %v472
      %v485 = vshrl.u32 %v484, 7
      %v486 = vand.u32 %v484, 127
      %v487 = vsub.s32 0, %v486
      %v488 = vsel %vm482, %v487, %v486
      %vm489 = vcmp.lt.s32.totalorder %v473, 0
      %v490 = vsub.s32 0, %v473
      %v491 = vsel %vm489, %v490, %v473
      %v492 = vshrl.u32 %v491, 7
      %v493 = vand.u32 %v491, 127
      %v494 = vsub.s32 0, %v493
      %v495 = vsel %vm489, %v494, %v493
      %vm496 = vcmp.lt.s32.totalorder %v474, 0
      %v497 = vsub.s32 0, %v474
      %v498 = vsel %vm496, %v497, %v474
      %v499 = vshrl.u32 %v498, 7
      %v500 = vand.u32 %v498, 127
      %v501 = vsub.s32 0, %v500
      %v502 = vsel %vm496, %v501, %v500
      %vm503 = vcmp.ne.s32.totalorder %v481, 0
      %vm504 = vcmp.ne.s32.totalorder %v488, 0
      %vm505 = vcmp.ne.s32.totalorder %v495, 0
      %vm506 = vcmp.ne.s32.totalorder %v502, 0
      %vm507 = vcmp.lt.s32.totalorder %v481, 0
      %vm508 = vcmp.lt.s32.totalorder %v488, 0
      %vm509 = vcmp.lt.s32.totalorder %v495, 0
      %vm510 = vcmp.lt.s32.totalorder %v502, 0
      %vm511 = vmand %vm507, %vm503
      %vm512 = vmand %vm508, %vm504
      %vm513 = vmand %vm509, %vm505
      %vm514 = vmand %vm510, %vm506
      %v515 = vadd.s32 %v481, 128
      %v516 = vadd.s32 %v488, 128
      %v517 = vadd.s32 %v495, 128
      %v518 = vadd.s32 %v502, 128
      %v519 = vsel %vm511, %v515, %v481
      %v520 = vsel %vm512, %v516, %v488
      %v521 = vsel %vm513, %v517, %v495
      %v522 = vsel %vm514, %v518, %v502
      %vm523 = vcmp.lt.s32.totalorder %v519, 4
      %vm524 = vcmp.lt.s32.totalorder %v520, 4
      %vm525 = vcmp.lt.s32.totalorder %v521, 4
      %vm526 = vcmp.lt.s32.totalorder %v522, 4
      %v527 = vsel %vm523, 1, 0
      %v528 = vsel %vm524, 1, 0
      %v529 = vsel %vm525, 1, 0
      %v530 = vsel %vm526, 1, 0
      %vm531 = vcmp.eq.s32.totalorder %v527, 1
      %vm532 = vcmp.eq.s32.totalorder %v528, 1
      %vm533 = vcmp.eq.s32.totalorder %v529, 1
      %vm534 = vcmp.eq.s32.totalorder %v530, 1
      %v535 = vsel %vm531, %v428, 0.0
      %v536 = vsel %vm532, %v441, 0.0
      %v537 = vsel %vm533, %v454, 0.0
      %v538 = vsel %vm534, %v467, 0.0
      %v539 = vpack.c.bf16 %v536, %v535
      %v540 = vpack.c.bf16 %v538, %v537
      %541 = vst [vmem:[%s218] sm:$0xff] %v539
      %542 = vst [vmem:[%s218 + $0x8] sm:$0xff] %v540
      %v543 = vadd.f32 %v535, %v536
      %v544 = vadd.f32 %v543, %v537
      %v545 = vadd.f32 %v544, %v538
      %546 = vadd.xlane.f32.xlu0 %v545
      %v547 = vpop.xlane.xlu0 %546
      %v548 = vmul.f32 %v535, %v535
      %v549 = vmul.f32 %v536, %v536
      %v550 = vmul.f32 %v537, %v537
      %v551 = vmul.f32 %v538, %v538
      %v552 = vadd.f32 %v548, %v549
      %v553 = vadd.f32 %v552, %v550
      %v554 = vadd.f32 %v553, %v551
      %555 = vadd.xlane.f32.xlu0 %v554
      %v556 = vpop.xlane.xlu0 %555
      %vm557 = vcmask 7168
      %v558 = vsel %vm557, %v547, %v556
      %vm559 = vcmask 15360
      %560 = vst.msk [vmem:[%s226] sm:$0xff] %vm559, %v558
      %s561 = smul.u32 4, %s20
      %p562 = scmp.lt.s32.totalorder %s19, 1
      %s563 = scalar_select %p562, %s19, 1
      %p564 = scmp.lt.s32.totalorder %s561, 3
      %s565 = scalar_select %p564, %s561, 3
      %s566 = smul.addr %s563, 4
      %s567 = sadd.s32 %s565, %s566
      %s568 = smul.addr %s567, 4
      %s569 = scalar_lea.vmem %s2, %s568
      %p570 = scmp.lt.s32.totalorder %s19, 1
      %s571 = scalar_select %p570, %s19, 1
      %p572 = scmp.lt.s32.totalorder %s20, 0
      %s573 = scalar_select %p572, %s20, 0
      %s574 = sadd.s32 %s573, %s571
      %s575 = smul.addr %s574, 8
      %s576 = scalar_lea.vmem %s3, %s575
      // Predicated region
      $region29: #{down_sampling_stage1_forward.4} parent=27 // pred_check
        %p577 = pneg %p96
      $region30: #{down_sampling_stage1_forward.4} parent=27 // pred_check_branch
        %579 = sbr.rel (%p577) target = $region32
      $region31: #{down_sampling_stage1_forward.4} parent=27 // pred_region
        %s580 = smul.u32 4, %s20
      $region32: #{down_sampling_stage1_forward.4} parent=27 // pred_fallthru
        _
      // Predicated region
      $region33: #{down_sampling_stage1_forward.4} parent=27 // pred_check
        %p581 = pneg %p124
      $region34: #{down_sampling_stage1_forward.4} parent=27 // pred_check_branch
        %583 = sbr.rel (%p581) target = $region36
      $region35: #{down_sampling_stage1_forward.4} parent=27 // pred_region
        _
      $region36: #{down_sampling_stage1_forward.4} parent=27 // pred_fallthru
        _
    $region28: #{down_sampling_stage1_forward.4} parent=5 // pred_fallthru
      _
    %p584 = scmp.le.s32.totalorder 2, %s10
    // Predicated region
    $region37: #{down_sampling_stage1_forward.4} parent=5 // pred_check
      %p585 = pneg %p584
    $region38: #{down_sampling_stage1_forward.4} parent=5 // pred_check_branch
      %587 = sbr.rel (%p585) target = $region40
    $region39: #{down_sampling_stage1_forward.4} parent=5 // pred_region
      %s588 = ssub.s32 %s10, 2
      // Predicated region
      $region41: #{down_sampling_stage1_forward.4} parent=39 // pred_check
        %p589 = pneg %p102
      $region42: #{down_sampling_stage1_forward.4} parent=39 // pred_check_branch
        %591 = sbr.rel (%p589) target = $region44
      $region43: #{down_sampling_stage1_forward.4} parent=39 // pred_region
        %s592 = smul.u32 4, %s22
        %p593 = scmp.lt.s32.totalorder %s21, 1
        %s594 = scalar_select %p593, %s21, 1
        %p595 = scmp.lt.s32.totalorder %s592, 3
        %s596 = scalar_select %p595, %s592, 3
        %s597 = smul.addr %s594, 4
        %s598 = sadd.s32 %s596, %s597
        %s599 = smul.addr %s598, 4
        %s600 = scalar_lea.vmem %s2, %s599
      $region44: #{down_sampling_stage1_forward.4} parent=39 // pred_fallthru
        _
      // Predicated region
      $region45: #{down_sampling_stage1_forward.4} parent=39 // pred_check
        %p601 = pneg %p130
      $region46: #{down_sampling_stage1_forward.4} parent=39 // pred_check_branch
        %603 = sbr.rel (%p601) target = $region48
      $region47: #{down_sampling_stage1_forward.4} parent=39 // pred_region
        %p604 = scmp.lt.s32.totalorder %s21, 1
        %s605 = scalar_select %p604, %s21, 1
        %p606 = scmp.lt.s32.totalorder %s22, 0
        %s607 = scalar_select %p606, %s22, 0
        %s608 = sadd.s32 %s607, %s605
        %s609 = smul.addr %s608, 8
        %s610 = scalar_lea.vmem %s3, %s609
      $region48: #{down_sampling_stage1_forward.4} parent=39 // pred_fallthru
        _
    $region40: #{down_sampling_stage1_forward.4} parent=5 // pred_fallthru
      _
  $region6: #{down_sampling_stage1_forward.4} parent=0 // loop_footer
    %s14 = sadd.s32 1, %s10
  $region7: #{down_sampling_stage1_forward.4} parent=0 // loop_footer_branch
    %9 = sbr.rel target = $region3
  $region8: #{down_sampling_stage1_forward.4} parent=0 // loop_exit
    _

// kernel: down_sampling_stage1_forward.3
$region0: #{down_sampling_stage1_forward.3}
  #allocation0 [shape = 'u32[]', space=smem, size = 0x4, offset = 0x4, fixed_abs, tag = 'smem constant byte address 0x4 - core index']
  #allocation1 [shape = 'u32[72,128]{1,0:T(1,128)}', space=vmem, size = 0x9000, scoped, tag = 'internal scratch']
  #allocation2 [shape = 'bf16[36,1024]{1,0:T(8,128)(2,1)}', space=vmem, size = 0x14000, scoped, tag = 'scratch operand']
  %s0 = inlined_call_operand.vmem [shape: bf16[2,1,16,1280], index: 0, kind: input, shape index: {}]
  %s1 = inlined_call_operand.vmem [shape: bf16[4,36], index: 1, kind: input, shape index: {}]
  %s2 = inlined_call_operand.vmem [shape: bf16[2,4,1024], index: 2, kind: output, shape index: {0}]
  %s3 = inlined_call_operand.vmem [shape: f32[2,1,4,2], index: 3, kind: output, shape index: {1}]
  %4 = xla_tuple %s2, %s3
  %s5 = sld [smem:[#allocation0]]
  $region49: #{down_sampling_stage1_forward.3} parent=0
    _
  %s7 = ssub.s32 1, %s5
  %s8 = scalar_select 0, %s7, %s5
  loop: start=0, step=1, limit=4
  $region2: #{down_sampling_stage1_forward.3} parent=0 // loop_pre_header
    _
  $region3: #{down_sampling_stage1_forward.3} parent=0 // loop_header
    %s10 = sphi 0, %s14
    %p11 = scmp.ge.s32.totalorder %s10, 4
    %s17 = sphi 0, %s29
    %s18 = sphi 0, %s25
    %s19 = sphi 0, %s17
    %s20 = sphi 0, %s18
    %s21 = sphi 0, %s19
    %s22 = sphi 0, %s20
    %s34 = sphi 0, %s36
    %s37 = sphi 0, %s34
    %s38 = sphi 0, %s37
    %s54 = sphi 0, %s38
    %s58 = sphi 0, %s58
    %s60 = sphi 0, %s58
    %s61 = sphi 0, %s60
    %s75 = sphi 0, %s61
    %s83 = sphi 0, %s85
    %s86 = sphi 0, %s83
    %s87 = sphi 0, %s86
    %s103 = sphi 0, %s87
    %s111 = sphi 0, %s113
    %s114 = sphi 0, %s111
    %s115 = sphi 0, %s114
    %s131 = sphi 0, %s115
  $region4: #{down_sampling_stage1_forward.3} parent=0 // loop_header_branch
    %13 = sbr.rel (%p11) target = $region8
  $region5: #{down_sampling_stage1_forward.3} parent=0 // loop_body
    %s15 = ssub.s32 %s10, 1
    %s16 = ssub.s32 %s10, 2
    %s23 = sadd.s32 1, %s18
    %p24 = scmp.ge.s32.totalorder %s23, 1
    %s25 = scalar_select %p24, 0, %s23
    %s26 = sadd.s32 1, %s17
    %s27 = scalar_select %p24, %s26, %s17
    %p28 = scmp.ge.s32.totalorder %s27, 2
    %s29 = scalar_select %p28, 0, %s27
    %s30 = ssub.s32 %s17, %s29
    %s31 = ssub.s32 %s18, %s25
    %s32 = sor.u32 %s30, %s31
    %p33 = scmp.eq.s32.totalorder %s32, 0
    %s35 = sadd.s32 %s34, 1
    %s36 = scalar_select %p33, %s34, %s35
    %p39 = pneg %p33
    %p40 = scmp.eq.s32.totalorder %s10, 1
    %p41 = por %p39, %p40
    %p42 = scmp.ne.s32.totalorder %s34, %s37
    %p43 = scmp.eq.s32.totalorder %s10, 0
    %p44 = por %p42, %p43
    %p45 = scmp.ne.s32.totalorder %s34, %s37
    %p46 = scmp.eq.s32.totalorder %s15, 1
    %p47 = por %p45, %p46
    %p48 = scmp.ne.s32.totalorder %s37, %s38
    %p49 = scmp.eq.s32.totalorder %s15, 0
    %p50 = por %p48, %p49
    %p51 = scmp.ne.s32.totalorder %s37, %s38
    %p52 = scmp.eq.s32.totalorder %s16, 1
    %p53 = por %p51, %p52
    %p55 = scmp.ne.s32.totalorder %s38, %s54
    %p56 = scmp.eq.s32.totalorder %s16, 0
    %p57 = por %p55, %p56
    %s59 = sadd.s32 %s58, 1
    %p62 = scmp.eq.s32.totalorder %s10, 1
    %p63 = scmp.ne.s32.totalorder %s58, %s60
    %p64 = scmp.eq.s32.totalorder %s10, 0
    %p65 = por %p63, %p64
    %p66 = scmp.ne.s32.totalorder %s58, %s60
    %p67 = scmp.eq.s32.totalorder %s15, 1
    %p68 = por %p66, %p67
    %p69 = scmp.ne.s32.totalorder %s60, %s61
    %p70 = scmp.eq.s32.totalorder %s15, 0
    %p71 = por %p69, %p70
    %p72 = scmp.ne.s32.totalorder %s60, %s61
    %p73 = scmp.eq.s32.totalorder %s16, 1
    %p74 = por %p72, %p73
    %p76 = scmp.ne.s32.totalorder %s61, %s75
    %p77 = scmp.eq.s32.totalorder %s16, 0
    %p78 = por %p76, %p77
    %s79 = ssub.s32 %s17, %s29
    %s80 = ssub.s32 %s18, %s25
    %s81 = sor.u32 %s79, %s80
    %p82 = scmp.eq.s32.totalorder %s81, 0
    %s84 = sadd.s32 %s83, 1
    %s85 = scalar_select %p82, %s83, %s84
    %p88 = pneg %p82
    %p89 = scmp.eq.s32.totalorder %s10, 1
    %p90 = por %p88, %p89
    %p91 = scmp.ne.s32.totalorder %s83, %s86
    %p92 = scmp.eq.s32.totalorder %s10, 0
    %p93 = por %p91, %p92
    %p94 = scmp.ne.s32.totalorder %s83, %s86
    %p95 = scmp.eq.s32.totalorder %s15, 1
    %p96 = por %p94, %p95
    %p97 = scmp.ne.s32.totalorder %s86, %s87
    %p98 = scmp.eq.s32.totalorder %s15, 0
    %p99 = por %p97, %p98
    %p100 = scmp.ne.s32.totalorder %s86, %s87
    %p101 = scmp.eq.s32.totalorder %s16, 1
    %p102 = por %p100, %p101
    %p104 = scmp.ne.s32.totalorder %s87, %s103
    %p105 = scmp.eq.s32.totalorder %s16, 0
    %p106 = por %p104, %p105
    %s107 = ssub.s32 %s17, %s29
    %s108 = ssub.s32 %s18, %s25
    %s109 = sor.u32 %s107, %s108
    %p110 = scmp.eq.s32.totalorder %s109, 0
    %s112 = sadd.s32 %s111, 1
    %s113 = scalar_select %p110, %s111, %s112
    %p116 = pneg %p110
    %p117 = scmp.eq.s32.totalorder %s10, 1
    %p118 = por %p116, %p117
    %p119 = scmp.ne.s32.totalorder %s111, %s114
    %p120 = scmp.eq.s32.totalorder %s10, 0
    %p121 = por %p119, %p120
    %p122 = scmp.ne.s32.totalorder %s111, %s114
    %p123 = scmp.eq.s32.totalorder %s15, 1
    %p124 = por %p122, %p123
    %p125 = scmp.ne.s32.totalorder %s114, %s115
    %p126 = scmp.eq.s32.totalorder %s15, 0
    %p127 = por %p125, %p126
    %p128 = scmp.ne.s32.totalorder %s114, %s115
    %p129 = scmp.eq.s32.totalorder %s16, 1
    %p130 = por %p128, %p129
    %p132 = scmp.ne.s32.totalorder %s115, %s131
    %p133 = scmp.eq.s32.totalorder %s16, 0
    %p134 = por %p132, %p133
    %p135 = scmp.le.s32.totalorder 1, %s10
    %p136 = scmp.lt.s32.totalorder %s10, 3
    %p137 = pnand %p135, %p136
    %p138 = pneg %p137
    // Predicated region
    $region9: #{down_sampling_stage1_forward.3} parent=5 // pred_check
      _
    $region10: #{down_sampling_stage1_forward.3} parent=5 // pred_check_branch
      %140 = sbr.rel (%p137) target = $region12
    $region11: #{down_sampling_stage1_forward.3} parent=5 // pred_region
      %s141 = ssub.s32 %s10, 1
      // Predicated region
      $region13: #{down_sampling_stage1_forward.3} parent=11 // pred_check
        %p142 = pneg %p71
      $region14: #{down_sampling_stage1_forward.3} parent=11 // pred_check_branch
        %144 = sbr.rel (%p142) target = $region16
      $region15: #{down_sampling_stage1_forward.3} parent=11 // pred_region
        _
      $region16: #{down_sampling_stage1_forward.3} parent=11 // pred_fallthru
        _
    $region12: #{down_sampling_stage1_forward.3} parent=5 // pred_fallthru
      _
    %p145 = scmp.lt.s32.totalorder %s10, 2
    // Predicated region
    $region17: #{down_sampling_stage1_forward.3} parent=5 // pred_check
      %p146 = pneg %p145
    $region18: #{down_sampling_stage1_forward.3} parent=5 // pred_check_branch
      %148 = sbr.rel (%p146) target = $region20
    $region19: #{down_sampling_stage1_forward.3} parent=5 // pred_region
      // Predicated region
      $region21: #{down_sampling_stage1_forward.3} parent=19 // pred_check
        %p149 = pneg %p44
      $region22: #{down_sampling_stage1_forward.3} parent=19 // pred_check_branch
        %151 = sbr.rel (%p149) target = $region24
      $region23: #{down_sampling_stage1_forward.3} parent=19 // pred_region
        %p152 = scmp.lt.s32.totalorder %s17, 1
        %s153 = scalar_select %p152, %s17, 1
        %p154 = scmp.lt.s32.totalorder %s18, 0
        %s155 = scalar_select %p154, %s18, 0
        %s156 = smul.addr %s155, 20
        %s157 = smul.addr %s153, 20
        %s158 = sadd.s32 %s156, %s157
        %s159 = smul.addr %s158, 4
        %s160 = scalar_lea.vmem %s0, %s159
      $region24: #{down_sampling_stage1_forward.3} parent=19 // pred_fallthru
        _
    $region20: #{down_sampling_stage1_forward.3} parent=5 // pred_fallthru
      _
    %p161 = scmp.le.s32.totalorder 1, %s10
    %p162 = scmp.lt.s32.totalorder %s10, 3
    %p163 = pnand %p161, %p162
    %p164 = pneg %p163
    // Predicated region
    $region25: #{down_sampling_stage1_forward.3} parent=5 // pred_check
      _
    $region26: #{down_sampling_stage1_forward.3} parent=5 // pred_check_branch
      %166 = sbr.rel (%p163) target = $region28
    $region27: #{down_sampling_stage1_forward.3} parent=5 // pred_region
      %s167 = ssub.s32 %s10, 1
      %p168 = scmp.lt.s32.totalorder %s19, 1
      %s169 = scalar_select %p168, %s19, 1
      %p170 = scmp.lt.s32.totalorder %s20, 0
      %s171 = scalar_select %p170, %s20, 0
      %s172 = smul.addr %s171, 20
      %s173 = smul.addr %s169, 20
      %s174 = sadd.s32 %s172, %s173
      %s175 = smul.addr %s174, 4
      %s176 = scalar_lea.vmem %s0, %s175
      %p177 = pneg %p50
      %p178 = pneg %p47
      %p179 = pneg %p71
      %p180 = pneg %p68
      %p181 = pneg %p99
      %p182 = pneg %p96
      %s183 = smul.u32 8, %s20
      %p184 = scmp.lt.s32.totalorder %s19, 1
      %s185 = scalar_select %p184, %s19, 1
      %p186 = scmp.lt.s32.totalorder %s183, 7
      %s187 = scalar_select %p186, %s183, 7
      %s188 = smul.addr %s185, 8
      %s189 = sadd.s32 %s187, %s188
      %s190 = smul.addr %s189, 2
      %s191 = scalar_lea.vmem %s2, %s190
      %p192 = pneg %p127
      %p193 = pneg %p124
      %p194 = scmp.lt.s32.totalorder %s19, 1
      %s195 = scalar_select %p194, %s19, 1
      %p196 = scmp.lt.s32.totalorder %s20, 0
      %s197 = scalar_select %p196, %s20, 0
      %s198 = sadd.s32 %s197, %s195
      %s199 = smul.addr %s198, 4
      %s200 = scalar_lea.vmem %s3, %s199
      %p201 = scmp.lt.s32.totalorder %s19, 1
      %s202 = scalar_select %p201, %s19, 1
      %p203 = scmp.lt.s32.totalorder %s20, 0
      %s204 = scalar_select %p203, %s20, 0
      %s205 = smul.addr %s204, 20
      %s206 = smul.addr %s202, 20
      %s207 = sadd.s32 %s205, %s206
      %s208 = smul.addr %s207, 4
      %s209 = scalar_lea.vmem %s0, %s208
      %s210 = smul.u32 8, %s20
      %p211 = scmp.lt.s32.totalorder %s19, 1
      %s212 = scalar_select %p211, %s19, 1
      %p213 = scmp.lt.s32.totalorder %s210, 7
      %s214 = scalar_select %p213, %s210, 7
      %s215 = smul.addr %s212, 8
      %s216 = sadd.s32 %s214, %s215
      %s217 = smul.addr %s216, 2
      %s218 = scalar_lea.vmem %s2, %s217
      %s219 = smul.u32 8, %s20
      %p220 = scmp.lt.s32.totalorder %s19, 1
      %s221 = scalar_select %p220, %s19, 1
      %p222 = scmp.lt.s32.totalorder %s20, 0
      %s223 = scalar_select %p222, %s20, 0
      %s224 = sadd.s32 %s223, %s221
      %s225 = smul.addr %s224, 4
      %s226 = scalar_lea.vmem %s3, %s225
      %v228 = vld [vmem:[%s209] sm:$0x33]
      %v229 = vld [vmem:[%s209 + $0x8] sm:$0x33]
      %v230 = vld [vmem:[%s209 + $0x10] sm:$0x33]
      %v231 = vld [vmem:[%s209 + $0x18] sm:$0x33]
      %232 = vst [vmem:[#allocation2] sm:$0x33] %v228
      %233 = vst [vmem:[#allocation2 + $0x8] sm:$0x33] %v229
      %234 = vst [vmem:[#allocation2 + $0x10] sm:$0x33] %v230
      %235 = vst [vmem:[#allocation2 + $0x18] sm:$0x33] %v231
      %v236 = vld [vmem:[%s209] sm:$0xcc]
      %v237 = vld [vmem:[%s209 + $0x8] sm:$0xcc]
      %v238 = vld [vmem:[%s209 + $0x10] sm:$0xcc]
      %v239 = vld [vmem:[%s209 + $0x18] sm:$0xcc]
      %240 = vst [vmem:[#allocation2] sm:$0xcc] %v236
      %241 = vst [vmem:[#allocation2 + $0x8] sm:$0xcc] %v237
      %242 = vst [vmem:[#allocation2 + $0x10] sm:$0xcc] %v238
      %243 = vst [vmem:[#allocation2 + $0x18] sm:$0xcc] %v239
      %v244 = vld [vmem:[%s209] sm:$0x33]
      %v245 = vld [vmem:[%s209 + $0x8] sm:$0x33]
      %v246 = vld [vmem:[%s209 + $0x10] sm:$0x33]
      %v247 = vld [vmem:[%s209 + $0x18] sm:$0x33]
      %v248 = vld [vmem:[%s209 + $0x20] sm:$0x3]
      %254 = vrot.lane.b32.xlu0 %v244, 127
      %v255 = vpop.permute.xlu0 %254
      %256 = vrot.lane.b32.xlu0 %v245, 127
      %v257 = vpop.permute.xlu0 %256
      %258 = vrot.lane.b32.xlu0 %v246, 127
      %v259 = vpop.permute.xlu0 %258
      %260 = vrot.lane.b32.xlu0 %v247, 127
      %v261 = vpop.permute.xlu0 %260
      %262 = vrot.lane.b32.xlu0 %v248, 127
      %v263 = vpop.permute.xlu0 %262
      %v264 = vrot.slane %v255, 4
      %v265 = vrot.slane %v257, 4
      %v266 = vrot.slane %v259, 4
      %v267 = vrot.slane %v261, 4
      %v268 = vrot.slane %v263, 4
      %vm269 = vcmask 1043456
      %v270 = vsel %vm269, %v264, %v265
      %vm271 = vcmask 1039360
      %v272 = vsel %vm271, %v255, %v270
      %v273 = vsel %vm269, %v265, %v266
      %v274 = vsel %vm271, %v257, %v273
      %v275 = vsel %vm269, %v266, %v267
      %v276 = vsel %vm271, %v259, %v275
      %v277 = vsel %vm269, %v267, %v268
      %v278 = vsel %vm271, %v261, %v277
      %283 = vst [vmem:[#allocation2 + $0x20] sm:$0x33] %v272
      %284 = vst [vmem:[#allocation2 + $0x28] sm:$0x33] %v274
      %285 = vst [vmem:[#allocation2 + $0x30] sm:$0x33] %v276
      %286 = vst [vmem:[#allocation2 + $0x38] sm:$0x33] %v278
      %v287 = vld [vmem:[%s209 + $0x28] sm:$0x33]
      %v288 = vld [vmem:[%s209 + $0x30] sm:$0x33]
      %v289 = vld [vmem:[%s209 + $0x38] sm:$0x33]
      %v290 = vld [vmem:[%s209 + $0x40] sm:$0x33]
      %v295 = vrot.slane %v287, 6
      %v296 = vrot.slane %v288, 6
      %v297 = vrot.slane %v289, 6
      %v298 = vrot.slane %v290, 6
      %303 = vst [vmem:[#allocation2 + $0x20] sm:$0xcc] %v295
      %304 = vst [vmem:[#allocation2 + $0x28] sm:$0xcc] %v296
      %305 = vst [vmem:[#allocation2 + $0x30] sm:$0xcc] %v297
      %306 = vst [vmem:[#allocation2 + $0x38] sm:$0xcc] %v298
      %v307 = vld [vmem:[%s209 + $0x28] sm:$0xcc]
      %v308 = vld [vmem:[%s209 + $0x30] sm:$0xcc]
      %v309 = vld [vmem:[%s209 + $0x38] sm:$0xcc]
      %v310 = vld [vmem:[%s209 + $0x40] sm:$0xcc]
      %v315 = vrot.slane %v307, 6
      %v316 = vrot.slane %v315, 4
      %v317 = vrot.slane %v308, 6
      %v318 = vrot.slane %v317, 4
      %v319 = vrot.slane %v309, 6
      %v320 = vrot.slane %v319, 4
      %v321 = vrot.slane %v310, 6
      %v322 = vrot.slane %v321, 4
      %327 = vst [vmem:[#allocation2 + $0x40] sm:$0x33] %v316
      %328 = vst [vmem:[#allocation2 + $0x48] sm:$0x33] %v318
      %329 = vst [vmem:[#allocation2 + $0x50] sm:$0x33] %v320
      %330 = vst [vmem:[#allocation2 + $0x58] sm:$0x33] %v322
      %v331 = vld [vmem:[%s209 + $0x28] sm:$0x33]
      %v332 = vld [vmem:[%s209 + $0x30] sm:$0x33]
      %v333 = vld [vmem:[%s209 + $0x38] sm:$0x33]
      %v334 = vld [vmem:[%s209 + $0x40] sm:$0x33]
      %v335 = vld [vmem:[%s209 + $0x48] sm:$0x3]
      %v341 = vrot.slane %v331, 6
      %v342 = vrot.slane %v332, 6
      %v343 = vrot.slane %v333, 6
      %v344 = vrot.slane %v334, 6
      %v345 = vrot.slane %v335, 6
      %346 = vrot.lane.b32.xlu0 %v341, 127
      %v347 = vpop.permute.xlu0 %346
      %348 = vrot.lane.b32.xlu0 %v342, 127
      %v349 = vpop.permute.xlu0 %348
      %350 = vrot.lane.b32.xlu0 %v343, 127
      %v351 = vpop.permute.xlu0 %350
      %352 = vrot.lane.b32.xlu0 %v344, 127
      %v353 = vpop.permute.xlu0 %352
      %354 = vrot.lane.b32.xlu0 %v345, 127
      %v355 = vpop.permute.xlu0 %354
      %v356 = vrot.slane %v347, 4
      %v357 = vrot.slane %v349, 4
      %v358 = vrot.slane %v351, 4
      %v359 = vrot.slane %v353, 4
      %v360 = vrot.slane %v355, 4
      %v361 = vsel %vm269, %v356, %v357
      %v362 = vsel %vm271, %v347, %v361
      %v363 = vsel %vm269, %v357, %v358
      %v364 = vsel %vm271, %v349, %v363
      %v365 = vsel %vm269, %v358, %v359
      %v366 = vsel %vm271, %v351, %v365
      %v367 = vsel %vm269, %v359, %v360
      %v368 = vsel %vm271, %v353, %v367
      %373 = vst [vmem:[#allocation2 + $0x40] sm:$0xcc] %v362
      %374 = vst [vmem:[#allocation2 + $0x48] sm:$0xcc] %v364
      %375 = vst [vmem:[#allocation2 + $0x50] sm:$0xcc] %v366
      %376 = vst [vmem:[#allocation2 + $0x58] sm:$0xcc] %v368
      %v377 = vld [vmem:[%s209 + $0x4] sm:$0x33]
      %v378 = vld [vmem:[%s209 + $0xc] sm:$0x33]
      %v379 = vld [vmem:[%s209 + $0x14] sm:$0x33]
      %v380 = vld [vmem:[%s209 + $0x1c] sm:$0x33]
      %381 = vst [vmem:[#allocation2 + $0x60] sm:$0x33] %v377
      %382 = vst [vmem:[#allocation2 + $0x68] sm:$0x33] %v378
      %383 = vst [vmem:[#allocation2 + $0x70] sm:$0x33] %v379
      %384 = vst [vmem:[#allocation2 + $0x78] sm:$0x33] %v380
      %v385 = vld [vmem:[%s209 + $0x4] sm:$0xcc]
      %v386 = vld [vmem:[%s209 + $0xc] sm:$0xcc]
      %v387 = vld [vmem:[%s209 + $0x14] sm:$0xcc]
      %v388 = vld [vmem:[%s209 + $0x1c] sm:$0xcc]
      %389 = vst [vmem:[#allocation2 + $0x60] sm:$0xcc] %v385
      %390 = vst [vmem:[#allocation2 + $0x68] sm:$0xcc] %v386
      %391 = vst [vmem:[#allocation2 + $0x70] sm:$0xcc] %v387
      %392 = vst [vmem:[#allocation2 + $0x78] sm:$0xcc] %v388
      %v393 = vld [vmem:[%s209 + $0x4] sm:$0x33]
      %v394 = vld [vmem:[%s209 + $0xc] sm:$0x33]
      %v395 = vld [vmem:[%s209 + $0x14] sm:$0x33]
      %v396 = vld [vmem:[%s209 + $0x1c] sm:$0x33]
      %v397 = vld [vmem:[%s209 + $0x24] sm:$0x3]
      %403 = vrot.lane.b32.xlu0 %v393, 127
      %v404 = vpop.permute.xlu0 %403
      %405 = vrot.lane.b32.xlu0 %v394, 127
      %v406 = vpop.permute.xlu0 %405
      %407 = vrot.lane.b32.xlu0 %v395, 127
      %v408 = vpop.permute.xlu0 %407
      %409 = vrot.lane.b32.xlu0 %v396, 127
      %v410 = vpop.permute.xlu0 %409
      %411 = vrot.lane.b32.xlu0 %v397, 127
      %v412 = vpop.permute.xlu0 %411
      %v413 = vrot.slane %v404, 4
      %v414 = vrot.slane %v406, 4
      %v415 = vrot.slane %v408, 4
      %v416 = vrot.slane %v410, 4
      %v417 = vrot.slane %v412, 4
      %v418 = vsel %vm269, %v413, %v414
      %v419 = vsel %vm271, %v404, %v418
      %v420 = vsel %vm269, %v414, %v415
      %v421 = vsel %vm271, %v406, %v420
      %v422 = vsel %vm269, %v415, %v416
      %v423 = vsel %vm271, %v408, %v422
      %v424 = vsel %vm269, %v416, %v417
      %v425 = vsel %vm271, %v410, %v424
      %430 = vst [vmem:[#allocation2 + $0x80] sm:$0x33] %v419
      %431 = vst [vmem:[#allocation2 + $0x88] sm:$0x33] %v421
      %432 = vst [vmem:[#allocation2 + $0x90] sm:$0x33] %v423
      %433 = vst [vmem:[#allocation2 + $0x98] sm:$0x33] %v425
      %v434 = vld [vmem:[%s1] sm:$0x3]
      %v435 = vld [vmem:[#allocation2] sm:$0xff]
      %v436 = vld [vmem:[#allocation2 + $0x8] sm:$0xff]
      %v437 = vld [vmem:[#allocation2 + $0x10] sm:$0xff]
      %v438 = vld [vmem:[#allocation2 + $0x18] sm:$0xff]
      %v439 = vld [vmem:[#allocation2 + $0x20] sm:$0xff]
      %v440 = vld [vmem:[#allocation2 + $0x28] sm:$0xff]
      %v441 = vld [vmem:[#allocation2 + $0x30] sm:$0xff]
      %v442 = vld [vmem:[#allocation2 + $0x38] sm:$0xff]
      %v443 = vld [vmem:[#allocation2 + $0x40] sm:$0xff]
      %v444 = vld [vmem:[#allocation2 + $0x48] sm:$0xff]
      %v445 = vld [vmem:[#allocation2 + $0x50] sm:$0xff]
      %v446 = vld [vmem:[#allocation2 + $0x58] sm:$0xff]
      %v447 = vld [vmem:[#allocation2 + $0x60] sm:$0xff]
      %v448 = vld [vmem:[#allocation2 + $0x68] sm:$0xff]
      %v449 = vld [vmem:[#allocation2 + $0x70] sm:$0xff]
      %v450 = vld [vmem:[#allocation2 + $0x78] sm:$0xff]
      %v451 = vld [vmem:[#allocation2 + $0x80] sm:$0x33]
      %v452 = vld [vmem:[#allocation2 + $0x88] sm:$0x33]
      %v453 = vld [vmem:[#allocation2 + $0x90] sm:$0x33]
      %v454 = vld [vmem:[#allocation2 + $0x98] sm:$0x33]
      %v475 = vunpack.c.l.b16 %v435
      %v476 = vunpack.c.h.b16 %v435
      %v477 = vunpack.c.l.b16 %v436
      %v478 = vunpack.c.h.b16 %v436
      %v479 = vunpack.c.l.b16 %v437
      %v480 = vunpack.c.h.b16 %v437
      %v481 = vunpack.c.l.b16 %v438
      %v482 = vunpack.c.h.b16 %v438
      %v483 = vunpack.c.l.b16 %v439
      %v484 = vunpack.c.h.b16 %v439
      %v485 = vunpack.c.l.b16 %v440
      %v486 = vunpack.c.h.b16 %v440
      %v487 = vunpack.c.l.b16 %v441
      %v488 = vunpack.c.h.b16 %v441
      %v489 = vunpack.c.l.b16 %v442
      %v490 = vunpack.c.h.b16 %v442
      %v491 = vunpack.c.l.b16 %v443
      %v492 = vunpack.c.h.b16 %v443
      %v493 = vunpack.c.l.b16 %v444
      %v494 = vunpack.c.h.b16 %v444
      %v495 = vunpack.c.l.b16 %v445
      %v496 = vunpack.c.h.b16 %v445
      %v497 = vunpack.c.l.b16 %v446
      %v498 = vunpack.c.h.b16 %v446
      %v499 = vunpack.c.l.b16 %v447
      %v500 = vunpack.c.h.b16 %v447
      %v501 = vunpack.c.l.b16 %v448
      %v502 = vunpack.c.h.b16 %v448
      %v503 = vunpack.c.l.b16 %v449
      %v504 = vunpack.c.h.b16 %v449
      %v505 = vunpack.c.l.b16 %v450
      %v506 = vunpack.c.h.b16 %v450
      %v507 = vunpack.c.l.b16 %v451
      %v508 = vunpack.c.h.b16 %v451
      %v509 = vunpack.c.l.b16 %v452
      %v510 = vunpack.c.h.b16 %v452
      %v511 = vunpack.c.l.b16 %v453
      %v512 = vunpack.c.h.b16 %v453
      %v513 = vunpack.c.l.b16 %v454
      %v514 = vunpack.c.h.b16 %v454
      %v515 = vpack.c.b16 %v483, %v475
      %v516 = vpack.c.b16 %v484, %v476
      %v517 = vpack.c.b16 %v485, %v477
      %v518 = vpack.c.b16 %v486, %v478
      %v519 = vpack.c.b16 %v487, %v479
      %v520 = vpack.c.b16 %v488, %v480
      %v521 = vpack.c.b16 %v489, %v481
      %v522 = vpack.c.b16 %v490, %v482
      %v523 = vpack.c.b16 %v499, %v491
      %v524 = vpack.c.b16 %v500, %v492
      %v525 = vpack.c.b16 %v501, %v493
      %v526 = vpack.c.b16 %v502, %v494
      %v527 = vpack.c.b16 %v503, %v495
      %v528 = vpack.c.b16 %v504, %v496
      %v529 = vpack.c.b16 %v505, %v497
      %v530 = vpack.c.b16 %v506, %v498
      %v531 = vpack.c.b16 %v507, %v507
      %v532 = vpack.c.b16 %v508, %v508
      %v533 = vpack.c.b16 %v509, %v509
      %v534 = vpack.c.b16 %v510, %v510
      %v535 = vpack.c.b16 %v511, %v511
      %v536 = vpack.c.b16 %v512, %v512
      %v537 = vpack.c.b16 %v513, %v513
      %v538 = vpack.c.b16 %v514, %v514
      %vm555 = vcmask 293888
      %v557 = vsel %vm555, %v434, 0
      %vm559 = vcmask 1041408
      %v561 = vsel %vm559, %v531, 0
      %v564 = vsel %vm559, %v532, 0
      %v567 = vsel %vm559, %v533, 0
      %v570 = vsel %vm559, %v534, 0
      %v573 = vsel %vm559, %v535, 0
      %v576 = vsel %vm559, %v536, 0
      %v579 = vsel %vm559, %v537, 0
      %v582 = vsel %vm559, %v538, 0
      %584 = vmatpush.bf16.msra.mxu0 0
      %585 = vmatpush.bf16.msra.mxu0 0
      %586 = vmatpush.bf16.msra.mxu0 0
      %587 = vmatpush.bf16.msra.mxu0 0
      %588 = vmatpush.bf16.msra.mxu0 0
      %589 = vmatpush.bf16.msra.mxu0 %v561
      %590 = vmatpush.bf16.msra.mxu0 %v523
      %591 = vmatpush.bf16.msra.mxu0 %v515
      %592 = vmatmul.bf16.gmra.mxu0 %v557
      %v593 = vpop.f32.mrf.mxu0
      %v594 = vadd.f32 0.0, %v593
      %v595 = vpop.f32.mrf.mxu0
      %596 = vdwg.mxu0
      %597 = vmatpush.bf16.msra.mxu0 0
      %598 = vmatpush.bf16.msra.mxu0 0
      %599 = vmatpush.bf16.msra.mxu0 0
      %600 = vmatpush.bf16.msra.mxu0 0
      %601 = vmatpush.bf16.msra.mxu0 0
      %602 = vmatpush.bf16.msra.mxu0 %v564
      %603 = vmatpush.bf16.msra.mxu0 %v524
      %604 = vmatpush.bf16.msra.mxu0 %v516
      %605 = vmatmul.bf16.gmra.mxu0 %v557
      %v606 = vpop.f32.mrf.mxu0
      %v607 = vadd.f32 0.0, %v606
      %v608 = vpop.f32.mrf.mxu0
      %609 = vdwg.mxu0
      %610 = vmatpush.bf16.msra.mxu0 0
      %611 = vmatpush.bf16.msra.mxu0 0
      %612 = vmatpush.bf16.msra.mxu0 0
      %613 = vmatpush.bf16.msra.mxu0 0
      %614 = vmatpush.bf16.msra.mxu0 0
      %615 = vmatpush.bf16.msra.mxu0 %v567
      %616 = vmatpush.bf16.msra.mxu0 %v525
      %617 = vmatpush.bf16.msra.mxu0 %v517
      %618 = vmatmul.bf16.gmra.mxu0 %v557
      %v619 = vpop.f32.mrf.mxu0
      %v620 = vadd.f32 0.0, %v619
      %v621 = vpop.f32.mrf.mxu0
      %622 = vdwg.mxu0
      %623 = vmatpush.bf16.msra.mxu0 0
      %624 = vmatpush.bf16.msra.mxu0 0
      %625 = vmatpush.bf16.msra.mxu0 0
      %626 = vmatpush.bf16.msra.mxu0 0
      %627 = vmatpush.bf16.msra.mxu0 0
      %628 = vmatpush.bf16.msra.mxu0 %v570
      %629 = vmatpush.bf16.msra.mxu0 %v526
      %630 = vmatpush.bf16.msra.mxu0 %v518
      %631 = vmatmul.bf16.gmra.mxu0 %v557
      %v632 = vpop.f32.mrf.mxu0
      %v633 = vadd.f32 0.0, %v632
      %v634 = vpop.f32.mrf.mxu0
      %635 = vdwg.mxu0
      %636 = vmatpush.bf16.msra.mxu0 0
      %637 = vmatpush.bf16.msra.mxu0 0
      %638 = vmatpush.bf16.msra.mxu0 0
      %639 = vmatpush.bf16.msra.mxu0 0
      %640 = vmatpush.bf16.msra.mxu0 0
      %641 = vmatpush.bf16.msra.mxu0 %v573
      %642 = vmatpush.bf16.msra.mxu0 %v527
      %643 = vmatpush.bf16.msra.mxu0 %v519
      %644 = vmatmul.bf16.gmra.mxu0 %v557
      %v645 = vpop.f32.mrf.mxu0
      %v646 = vadd.f32 0.0, %v645
      %v647 = vpop.f32.mrf.mxu0
      %648 = vdwg.mxu0
      %649 = vmatpush.bf16.msra.mxu0 0
      %650 = vmatpush.bf16.msra.mxu0 0
      %651 = vmatpush.bf16.msra.mxu0 0
      %652 = vmatpush.bf16.msra.mxu0 0
      %653 = vmatpush.bf16.msra.mxu0 0
      %654 = vmatpush.bf16.msra.mxu0 %v576
      %655 = vmatpush.bf16.msra.mxu0 %v528
      %656 = vmatpush.bf16.msra.mxu0 %v520
      %657 = vmatmul.bf16.gmra.mxu0 %v557
      %v658 = vpop.f32.mrf.mxu0
      %v659 = vadd.f32 0.0, %v658
      %v660 = vpop.f32.mrf.mxu0
      %661 = vdwg.mxu0
      %662 = vmatpush.bf16.msra.mxu0 0
      %663 = vmatpush.bf16.msra.mxu0 0
      %664 = vmatpush.bf16.msra.mxu0 0
      %665 = vmatpush.bf16.msra.mxu0 0
      %666 = vmatpush.bf16.msra.mxu0 0
      %667 = vmatpush.bf16.msra.mxu0 %v579
      %668 = vmatpush.bf16.msra.mxu0 %v529
      %669 = vmatpush.bf16.msra.mxu0 %v521
      %670 = vmatmul.bf16.gmra.mxu0 %v557
      %v671 = vpop.f32.mrf.mxu0
      %v672 = vadd.f32 0.0, %v671
      %v673 = vpop.f32.mrf.mxu0
      %674 = vdwg.mxu0
      %675 = vmatpush.bf16.msra.mxu0 0
      %676 = vmatpush.bf16.msra.mxu0 0
      %677 = vmatpush.bf16.msra.mxu0 0
      %678 = vmatpush.bf16.msra.mxu0 0
      %679 = vmatpush.bf16.msra.mxu0 0
      %680 = vmatpush.bf16.msra.mxu0 %v582
      %681 = vmatpush.bf16.msra.mxu0 %v530
      %682 = vmatpush.bf16.msra.mxu0 %v522
      %683 = vmatmul.bf16.gmra.mxu0 %v557
      %v684 = vpop.f32.mrf.mxu0
      %v685 = vadd.f32 0.0, %v684
      %v686 = vpop.f32.mrf.mxu0
      %687 = vdwg.mxu0
      %v688 = vlaneseq
      %v689 = vand.u32 %v688, 127
      %v690 = vadd.s32 %v689, 128
      %v691 = vadd.s32 %v689, 256
      %v692 = vadd.s32 %v689, 384
      %v693 = vadd.s32 %v689, 512
      %v694 = vadd.s32 %v689, 640
      %v695 = vadd.s32 %v689, 768
      %v696 = vadd.s32 %v689, 896
      %vm697 = vcmp.lt.s32.totalorder %v689, 0
      %v698 = vsub.s32 0, %v689
      %v699 = vsel %vm697, %v698, %v689
      %v700 = vshrl.u32 %v699, 7
      %v701 = vand.u32 %v699, 127
      %v702 = vsub.s32 0, %v701
      %v703 = vsel %vm697, %v702, %v701
      %vm704 = vcmp.lt.s32.totalorder %v690, 0
      %v705 = vsub.s32 0, %v690
      %v706 = vsel %vm704, %v705, %v690
      %v707 = vshrl.u32 %v706, 7
      %v708 = vand.u32 %v706, 127
      %v709 = vsub.s32 0, %v708
      %v710 = vsel %vm704, %v709, %v708
      %vm711 = vcmp.lt.s32.totalorder %v691, 0
      %v712 = vsub.s32 0, %v691
      %v713 = vsel %vm711, %v712, %v691
      %v714 = vshrl.u32 %v713, 7
      %v715 = vand.u32 %v713, 127
      %v716 = vsub.s32 0, %v715
      %v717 = vsel %vm711, %v716, %v715
      %vm718 = vcmp.lt.s32.totalorder %v692, 0
      %v719 = vsub.s32 0, %v692
      %v720 = vsel %vm718, %v719, %v692
      %v721 = vshrl.u32 %v720, 7
      %v722 = vand.u32 %v720, 127
      %v723 = vsub.s32 0, %v722
      %v724 = vsel %vm718, %v723, %v722
      %vm725 = vcmp.lt.s32.totalorder %v693, 0
      %v726 = vsub.s32 0, %v693
      %v727 = vsel %vm725, %v726, %v693
      %v728 = vshrl.u32 %v727, 7
      %v729 = vand.u32 %v727, 127
      %v730 = vsub.s32 0, %v729
      %v731 = vsel %vm725, %v730, %v729
      %vm732 = vcmp.lt.s32.totalorder %v694, 0
      %v733 = vsub.s32 0, %v694
      %v734 = vsel %vm732, %v733, %v694
      %v735 = vshrl.u32 %v734, 7
      %v736 = vand.u32 %v734, 127
      %v737 = vsub.s32 0, %v736
      %v738 = vsel %vm732, %v737, %v736
      %vm739 = vcmp.lt.s32.totalorder %v695, 0
      %v740 = vsub.s32 0, %v695
      %v741 = vsel %vm739, %v740, %v695
      %v742 = vshrl.u32 %v741, 7
      %v743 = vand.u32 %v741, 127
      %v744 = vsub.s32 0, %v743
      %v745 = vsel %vm739, %v744, %v743
      %vm746 = vcmp.lt.s32.totalorder %v696, 0
      %v747 = vsub.s32 0, %v696
      %v748 = vsel %vm746, %v747, %v696
      %v749 = vshrl.u32 %v748, 7
      %v750 = vand.u32 %v748, 127
      %v751 = vsub.s32 0, %v750
      %v752 = vsel %vm746, %v751, %v750
      %vm753 = vcmp.ne.s32.totalorder %v703, 0
      %vm754 = vcmp.ne.s32.totalorder %v710, 0
      %vm755 = vcmp.ne.s32.totalorder %v717, 0
      %vm756 = vcmp.ne.s32.totalorder %v724, 0
      %vm757 = vcmp.ne.s32.totalorder %v731, 0
      %vm758 = vcmp.ne.s32.totalorder %v738, 0
      %vm759 = vcmp.ne.s32.totalorder %v745, 0
      %vm760 = vcmp.ne.s32.totalorder %v752, 0
      %vm761 = vcmp.lt.s32.totalorder %v703, 0
      %vm762 = vcmp.lt.s32.totalorder %v710, 0
      %vm763 = vcmp.lt.s32.totalorder %v717, 0
      %vm764 = vcmp.lt.s32.totalorder %v724, 0
      %vm765 = vcmp.lt.s32.totalorder %v731, 0
      %vm766 = vcmp.lt.s32.totalorder %v738, 0
      %vm767 = vcmp.lt.s32.totalorder %v745, 0
      %vm768 = vcmp.lt.s32.totalorder %v752, 0
      %vm769 = vmand %vm761, %vm753
      %vm770 = vmand %vm762, %vm754
      %vm771 = vmand %vm763, %vm755
      %vm772 = vmand %vm764, %vm756
      %vm773 = vmand %vm765, %vm757
      %vm774 = vmand %vm766, %vm758
      %vm775 = vmand %vm767, %vm759
      %vm776 = vmand %vm768, %vm760
      %v777 = vadd.s32 %v703, 128
      %v778 = vadd.s32 %v710, 128
      %v779 = vadd.s32 %v717, 128
      %v780 = vadd.s32 %v724, 128
      %v781 = vadd.s32 %v731, 128
      %v782 = vadd.s32 %v738, 128
      %v783 = vadd.s32 %v745, 128
      %v784 = vadd.s32 %v752, 128
      %v785 = vsel %vm769, %v777, %v703
      %v786 = vsel %vm770, %v778, %v710
      %v787 = vsel %vm771, %v779, %v717
      %v788 = vsel %vm772, %v780, %v724
      %v789 = vsel %vm773, %v781, %v731
      %v790 = vsel %vm774, %v782, %v738
      %v791 = vsel %vm775, %v783, %v745
      %v792 = vsel %vm776, %v784, %v752
      %vm793 = vcmp.lt.s32.totalorder %v785, 8
      %vm794 = vcmp.lt.s32.totalorder %v786, 8
      %vm795 = vcmp.lt.s32.totalorder %v787, 8
      %vm796 = vcmp.lt.s32.totalorder %v788, 8
      %vm797 = vcmp.lt.s32.totalorder %v789, 8
      %vm798 = vcmp.lt.s32.totalorder %v790, 8
      %vm799 = vcmp.lt.s32.totalorder %v791, 8
      %vm800 = vcmp.lt.s32.totalorder %v792, 8
      %v801 = vsel %vm793, 1, 0
      %v802 = vsel %vm794, 1, 0
      %v803 = vsel %vm795, 1, 0
      %v804 = vsel %vm796, 1, 0
      %v805 = vsel %vm797, 1, 0
      %v806 = vsel %vm798, 1, 0
      %v807 = vsel %vm799, 1, 0
      %v808 = vsel %vm800, 1, 0
      %vm809 = vcmp.eq.s32.totalorder %v801, 1
      %vm810 = vcmp.eq.s32.totalorder %v802, 1
      %vm811 = vcmp.eq.s32.totalorder %v803, 1
      %vm812 = vcmp.eq.s32.totalorder %v804, 1
      %vm813 = vcmp.eq.s32.totalorder %v805, 1
      %vm814 = vcmp.eq.s32.totalorder %v806, 1
      %vm815 = vcmp.eq.s32.totalorder %v807, 1
      %vm816 = vcmp.eq.s32.totalorder %v808, 1
      %v817 = vsel %vm809, %v594, 0.0
      %v818 = vsel %vm810, %v607, 0.0
      %v819 = vsel %vm811, %v620, 0.0
      %v820 = vsel %vm812, %v633, 0.0
      %v821 = vsel %vm813, %v646, 0.0
      %v822 = vsel %vm814, %v659, 0.0
      %v823 = vsel %vm815, %v672, 0.0
      %v824 = vsel %vm816, %v685, 0.0
      %v825 = vpack.c.bf16 %v818, %v817
      %v826 = vpack.c.bf16 %v820, %v819
      %v827 = vpack.c.bf16 %v822, %v821
      %v828 = vpack.c.bf16 %v824, %v823
      %v833 = vrot.slane %v825, 2
      %v834 = vrot.slane %v826, 4
      %v835 = vrot.slane %v826, 6
      %v836 = vrot.slane %v827, 2
      %v837 = vrot.slane %v828, 4
      %v838 = vrot.slane %v828, 6
      %v841 = vsel %vm559, %v825, %v833
      %vm842 = vcmask 1045508
      %v845 = vsel %vm842, %v834, %v835
      %vm846 = vcmask 1043456
      %v847 = vsel %vm846, %v841, %v845
      %v850 = vsel %vm559, %v827, %v836
      %v853 = vsel %vm842, %v837, %v838
      %v854 = vsel %vm846, %v850, %v853
      %857 = vst [vmem:[%s218] sm:$0xff] %v847
      %858 = vst [vmem:[%s218 + $0x8] sm:$0xff] %v854
      %v859 = vsel %vm846, %v817, 0.0
      %v860 = vsel %vm846, %v818, 0.0
      %v861 = vadd.f32 %v859, %v860
      %v862 = vsel %vm846, %v819, 0.0
      %v863 = vadd.f32 %v861, %v862
      %v864 = vsel %vm846, %v820, 0.0
      %v865 = vadd.f32 %v863, %v864
      %v866 = vsel %vm846, %v821, 0.0
      %v867 = vadd.f32 %v865, %v866
      %v868 = vsel %vm846, %v822, 0.0
      %v869 = vadd.f32 %v867, %v868
      %v870 = vsel %vm846, %v823, 0.0
      %v871 = vadd.f32 %v869, %v870
      %v872 = vsel %vm846, %v824, 0.0
      %v873 = vadd.f32 %v871, %v872
      %874 = vadd.xlane.f32.xlu0 %v873
      %v875 = vpop.xlane.xlu0 %874
      %v876 = vmul.f32 %v817, %v817
      %v877 = vmul.f32 %v818, %v818
      %v878 = vmul.f32 %v819, %v819
      %v879 = vmul.f32 %v820, %v820
      %v880 = vmul.f32 %v821, %v821
      %v881 = vmul.f32 %v822, %v822
      %v882 = vmul.f32 %v823, %v823
      %v883 = vmul.f32 %v824, %v824
      %v884 = vsel %vm846, %v876, 0.0
      %v885 = vsel %vm846, %v877, 0.0
      %v886 = vadd.f32 %v884, %v885
      %v887 = vsel %vm846, %v878, 0.0
      %v888 = vadd.f32 %v886, %v887
      %v889 = vsel %vm846, %v879, 0.0
      %v890 = vadd.f32 %v888, %v889
      %v891 = vsel %vm846, %v880, 0.0
      %v892 = vadd.f32 %v890, %v891
      %v893 = vsel %vm846, %v881, 0.0
      %v894 = vadd.f32 %v892, %v893
      %v895 = vsel %vm846, %v882, 0.0
      %v896 = vadd.f32 %v894, %v895
      %v897 = vsel %vm846, %v883, 0.0
      %v898 = vadd.f32 %v896, %v897
      %899 = vadd.xlane.f32.xlu0 %v898
      %v900 = vpop.xlane.xlu0 %899
      %vm901 = vcmask 7168
      %v902 = vsel %vm901, %v875, %v900
      %vm903 = vcmask 11264
      %904 = vst.msk [vmem:[%s226] sm:$0xf] %vm903, %v902
      %s905 = smul.u32 8, %s20
      %p906 = scmp.lt.s32.totalorder %s19, 1
      %s907 = scalar_select %p906, %s19, 1
      %p908 = scmp.lt.s32.totalorder %s905, 7
      %s909 = scalar_select %p908, %s905, 7
      %s910 = smul.addr %s907, 8
      %s911 = sadd.s32 %s909, %s910
      %s912 = smul.addr %s911, 2
      %s913 = scalar_lea.vmem %s2, %s912
      %p914 = scmp.lt.s32.totalorder %s19, 1
      %s915 = scalar_select %p914, %s19, 1
      %p916 = scmp.lt.s32.totalorder %s20, 0
      %s917 = scalar_select %p916, %s20, 0
      %s918 = sadd.s32 %s917, %s915
      %s919 = smul.addr %s918, 4
      %s920 = scalar_lea.vmem %s3, %s919
      // Predicated region
      $region29: #{down_sampling_stage1_forward.3} parent=27 // pred_check
        %p921 = pneg %p96
      $region30: #{down_sampling_stage1_forward.3} parent=27 // pred_check_branch
        %923 = sbr.rel (%p921) target = $region32
      $region31: #{down_sampling_stage1_forward.3} parent=27 // pred_region
        %s924 = smul.u32 8, %s20
      $region32: #{down_sampling_stage1_forward.3} parent=27 // pred_fallthru
        _
      // Predicated region
      $region33: #{down_sampling_stage1_forward.3} parent=27 // pred_check
        %p925 = pneg %p124
      $region34: #{down_sampling_stage1_forward.3} parent=27 // pred_check_branch
        %927 = sbr.rel (%p925) target = $region36
      $region35: #{down_sampling_stage1_forward.3} parent=27 // pred_region
        _
      $region36: #{down_sampling_stage1_forward.3} parent=27 // pred_fallthru
        _
    $region28: #{down_sampling_stage1_forward.3} parent=5 // pred_fallthru
      _
    %p928 = scmp.le.s32.totalorder 2, %s10
    // Predicated region
    $region37: #{down_sampling_stage1_forward.3} parent=5 // pred_check
      %p929 = pneg %p928
    $region38: #{down_sampling_stage1_forward.3} parent=5 // pred_check_branch
      %931 = sbr.rel (%p929) target = $region40
    $region39: #{down_sampling_stage1_forward.3} parent=5 // pred_region
      %s932 = ssub.s32 %s10, 2
      // Predicated region
      $region41: #{down_sampling_stage1_forward.3} parent=39 // pred_check
        %p933 = pneg %p102
      $region42: #{down_sampling_stage1_forward.3} parent=39 // pred_check_branch
        %935 = sbr.rel (%p933) target = $region44
      $region43: #{down_sampling_stage1_forward.3} parent=39 // pred_region
        %s936 = smul.u32 8, %s22
        %p937 = scmp.lt.s32.totalorder %s21, 1
        %s938 = scalar_select %p937, %s21, 1
        %p939 = scmp.lt.s32.totalorder %s936, 7
        %s940 = scalar_select %p939, %s936, 7
        %s941 = smul.addr %s938, 8
        %s942 = sadd.s32 %s940, %s941
        %s943 = smul.addr %s942, 2
        %s944 = scalar_lea.vmem %s2, %s943
      $region44: #{down_sampling_stage1_forward.3} parent=39 // pred_fallthru
        _
      // Predicated region
      $region45: #{down_sampling_stage1_forward.3} parent=39 // pred_check
        %p945 = pneg %p130
      $region46: #{down_sampling_stage1_forward.3} parent=39 // pred_check_branch
        %947 = sbr.rel (%p945) target = $region48
      $region47: #{down_sampling_stage1_forward.3} parent=39 // pred_region
        %p948 = scmp.lt.s32.totalorder %s21, 1
        %s949 = scalar_select %p948, %s21, 1
        %p950 = scmp.lt.s32.totalorder %s22, 0
        %s951 = scalar_select %p950, %s22, 0
        %s952 = sadd.s32 %s951, %s949
        %s953 = smul.addr %s952, 4
        %s954 = scalar_lea.vmem %s3, %s953
      $region48: #{down_sampling_stage1_forward.3} parent=39 // pred_fallthru
        _
    $region40: #{down_sampling_stage1_forward.3} parent=5 // pred_fallthru
      _
  $region6: #{down_sampling_stage1_forward.3} parent=0 // loop_footer
    %s14 = sadd.s32 1, %s10
  $region7: #{down_sampling_stage1_forward.3} parent=0 // loop_footer_branch
    %9 = sbr.rel target = $region3
  $region8: #{down_sampling_stage1_forward.3} parent=0 // loop_exit
    _

</llo_original>
